<compile_context>
chip_gen: v6e
topology: v6e:2x2x1
jax: 0.10.0
libtpu: 0.0.40
codegen_flags: <defaults>
</compile_context>

<pallas_src>
import jax
import jax.numpy as jnp
from jax.experimental import pallas as pl
from jax.experimental.pallas import tpu as pltpu


def _round_up(x, m):
    return ((x + m - 1) // m) * m


def _pick_batch_tile(B, cap, min_steps=4):
    """8-aligned batch tile <= cap that minimizes padding.

    Keeps >= `min_steps` grid steps when the batch is large enough (but never
    shrinks the tile below 128 rows for step-count reasons, so the MXU still
    gets a reasonably tall LHS on v6e/v7x). Ties broken toward larger tiles.
    """
    b8 = _round_up(max(B, 1), 8)
    cap = max(8, min(_round_up(cap, 8), b8))
    if b8 >= min_steps * 8:
        cap = min(cap, max(128, _round_up(pl.cdiv(b8, min_steps), 8)))
    cap = max(cap, 8)
    best_tb, best_pad = 8, _round_up(B, 8) - B
    for tb in range(8, cap + 1, 8):
        pad = _round_up(B, tb) - B
        if pad < best_pad or (pad == best_pad and tb > best_tb):
            best_tb, best_pad = tb, pad
    return best_tb


def _vmem_budget_bytes(tb, D_in, D_hid, D_out, act_itemsize, param_itemsize):
    """Explicit VMEM budget: 2x activation tiles + 2x params + f32 temps."""
    act = 2 * tb * D_in * act_itemsize + 2 * tb * D_out * act_itemsize
    params = 2 * (D_hid * D_in + D_hid + D_out * D_hid + D_out) * param_itemsize
    inter = tb * D_hid * 4 + tb * D_out * 4           # f32 h and y intermediates
    need = act + params + inter
    # 2x headroom + 4 MiB slack, clamped to v7x's 64 MiB physical VMEM per TC.
    return min(int(need * 2) + (4 << 20), 64 << 20)


def _mlp_kernel(x_ref, w1t_ref, b1_ref, w2t_ref, b2_ref, o_ref):
    # Linear 1: (TB, D_in) @ (D_in, D_hid) -> (TB, D_hid); f32 MXU accumulation.
    h = jnp.dot(x_ref[...], w1t_ref[...], preferred_element_type=jnp.float32)
    # Bias + ReLU on the VPU, in f32.
    h = jnp.maximum(h + b1_ref[...], 0.0)
    # Linear 2: (TB, D_hid) @ (D_hid, D_out) -> (TB, D_out).
    # (astype is a no-op for f32 params; intentional precision drop for bf16.)
    y = jnp.dot(h.astype(w2t_ref.dtype), w2t_ref[...],
                preferred_element_type=jnp.float32)
    o_ref[...] = (y + b2_ref[...]).astype(o_ref.dtype)


def my_sequential_forward(x, w1, b1, w2, b2, *, batch_tile=512):
    """Fused forward of MYsequential(Linear, ReLU, Linear).

    x : (B, D_in)
    w1: (D_hid, D_in)   torch nn.Linear layout (out, in)
    b1: (D_hid,)
    w2: (D_out, D_hid)
    b2: (D_out,)
    returns (B, D_out)
    """
    B, D_in = x.shape
    D_hid, _ = w1.shape
    D_out, _ = w2.shape

    # One-time HBM transposes -> MXU-native (M,K)x(K,N) matmuls in-kernel.
    # (In production, store the params pre-transposed at init instead.)
    w1_t = w1.T                      # (D_in, D_hid)
    w2_t = w2.T                      # (D_hid, D_out)
    # Metadata-only reshapes for lane-broadcast of the biases.
    b1_r = b1.reshape(1, D_hid)
    b2_r = b2.reshape(1, D_out)

    tb = _pick_batch_tile(B, batch_tile)
    B_pad = _round_up(B, tb)
    x_p = x if B_pad == B else jnp.pad(x, ((0, B_pad - B), (0, 0)))

    grid = (pl.cdiv(B_pad, tb),)

    itemsize = lambda a: a.size * a.dtype.itemsize
    cost = pl.CostEstimate(
        flops=2 * B_pad * (D_in * D_hid + D_hid * D_out),
        transcendentals=0,
        bytes_accessed=(itemsize(x_p) + itemsize(w1_t) + itemsize(b1_r)
                        + itemsize(w2_t) + itemsize(b2_r)
                        + B_pad * D_out * x.dtype.itemsize),
    )

    vmem_limit = _vmem_budget_bytes(tb, D_in, D_hid, D_out,
                                    x.dtype.itemsize, w1.dtype.itemsize)

    out = pl.pallas_call(
        _mlp_kernel,
        out_shape=jax.ShapeDtypeStruct((B_pad, D_out), x.dtype),
        grid=grid,
        in_specs=[
            # Activation stream: one batch tile per grid step (auto
            # double-buffered by the Pallas pipeline).
            pl.BlockSpec((tb, D_in), lambda i: (i, 0)),
            # Parameters: constant block index -> DMA'd once, VMEM-resident
            # across all batch tiles.
            pl.BlockSpec((D_in, D_hid), lambda i: (0, 0)),
            pl.BlockSpec((1, D_hid), lambda i: (0, 0)),
            pl.BlockSpec((D_hid, D_out), lambda i: (0, 0)),
            pl.BlockSpec((1, D_out), lambda i: (0, 0)),
        ],
        out_specs=pl.BlockSpec((tb, D_out), lambda i: (i, 0)),
        compiler_params=pltpu.CompilerParams(
            dimension_semantics=("parallel",),      # v7x: shard batch over 2 TCs
            vmem_limit_bytes=vmem_limit,
        ),
        cost_estimate=cost,
    )(x_p, w1_t, b1_r, w2_t, b2_r)

    return out if B_pad == B else out[:B]


if __name__ == "__main__":
    # Small MLP shapes consistent with the container's canonical use:
    # lane-friendly feature dims (multiples of 128) and enough batch rows that
    # the batch-tiled grid has ~4 steps (tb=512) so DMA/compute overlap is
    # actually exercised.
    B, D_IN, D_HID, D_OUT = 2048, 128, 256, 128

    key = jax.random.PRNGKey(0)
    kx, kw1, kb1, kw2, kb2 = jax.random.split(key, 5)

    x = jax.random.normal(kx, (B, D_IN), dtype=jnp.float32)
    # torch nn.Linear stores weights as (out, in); keep that layout here and
    # let the wrapper transpose once (move to init time in production).
    w1 = jax.random.normal(kw1, (D_HID, D_IN), dtype=jnp.float32) * 0.05
    b1 = jax.random.normal(kb1, (D_HID,), dtype=jnp.float32) * 0.05
    w2 = jax.random.normal(kw2, (D_OUT, D_HID), dtype=jnp.float32) * 0.05
    b2 = jax.random.normal(kb2, (D_OUT,), dtype=jnp.float32) * 0.05

    y = my_sequential_forward(x, w1, b1, w2, b2)
    y = jax.block_until_ready(y)

    # Pure-JAX reference of the sequential forward (Linear -> ReLU -> Linear).
    ref = jnp.maximum(x @ w1.T + b1, 0.0) @ w2.T + b2
    assert y.shape == (B, D_OUT)
    assert jnp.allclose(y, ref, atol=1e-3, rtol=1e-3)

    print("KERNEL_OK")
</pallas_src>

<mosaic_0001>
module attributes {stable_mosaic.version = 11 : i64} {
  func.func @_mlp_kernel(%arg0: i32, %arg1: memref<512x128xf32, #tpu.memory_space<vmem>>, %arg2: memref<128x256xf32, #tpu.memory_space<vmem>>, %arg3: memref<1x256xf32, #tpu.memory_space<vmem>>, %arg4: memref<256x128xf32, #tpu.memory_space<vmem>>, %arg5: memref<1x128xf32, #tpu.memory_space<vmem>>, %arg6: memref<512x128xf32, #tpu.memory_space<vmem>>) attributes {dimension_semantics = [#tpu.dimension_semantics<parallel>], iteration_bounds = array<i64: 4>, scalar_prefetch = 0 : i64, scratch_operands = 0 : i64, tpu.core_type = #tpu.core_type<tc>, window_params = [{transform_indices = @transform_0, window_bounds = array<i64: 512, 128>}, {pipeline_mode = #tpu.pipeline_mode<synchronous>, transform_indices = @transform_1, window_bounds = array<i64: 128, 256>}, {pipeline_mode = #tpu.pipeline_mode<synchronous>, transform_indices = @transform_2, window_bounds = array<i64: 1, 256>}, {pipeline_mode = #tpu.pipeline_mode<synchronous>, transform_indices = @transform_3, window_bounds = array<i64: 256, 128>}, {pipeline_mode = #tpu.pipeline_mode<synchronous>, transform_indices = @transform_4, window_bounds = array<i64: 1, 128>}, {transform_indices = @transform_5, window_bounds = array<i64: 512, 128>}]} {
    %c0 = arith.constant 0 : index
    %c0_0 = arith.constant 0 : index
    %0 = vector.load %arg1[%c0, %c0_0] : memref<512x128xf32, #tpu.memory_space<vmem>>, vector<512x128xf32>
    %c0_1 = arith.constant 0 : index
    %c0_2 = arith.constant 0 : index
    %1 = vector.load %arg2[%c0_1, %c0_2] : memref<128x256xf32, #tpu.memory_space<vmem>>, vector<128x256xf32>
    %cst = arith.constant dense<0.000000e+00> : vector<512x256xf32>
    %2 = tpu.matmul %0, %1, %cst {dimension_numbers = #tpu.dot_dimension_numbers<[1], [0], [0], [1], [0, 0, 1, 1], [], []>} : vector<512x128xf32>, vector<128x256xf32>, vector<512x256xf32> -> vector<512x256xf32>
    %c0_3 = arith.constant 0 : index
    %c0_4 = arith.constant 0 : index
    %3 = vector.load %arg3[%c0_3, %c0_4] : memref<1x256xf32, #tpu.memory_space<vmem>>, vector<1x256xf32>
    %4 = vector.broadcast %3 : vector<1x256xf32> to vector<512x256xf32>
    %5 = arith.addf %2, %4 : vector<512x256xf32>
    %cst_5 = arith.constant 0.000000e+00 : f32
    %6 = vector.broadcast %cst_5 : f32 to vector<512x256xf32>
    %7 = arith.maximumf %5, %6 : vector<512x256xf32>
    %c0_6 = arith.constant 0 : index
    %c0_7 = arith.constant 0 : index
    %8 = vector.load %arg4[%c0_6, %c0_7] : memref<256x128xf32, #tpu.memory_space<vmem>>, vector<256x128xf32>
    %cst_8 = arith.constant dense<0.000000e+00> : vector<512x128xf32>
    %9 = tpu.matmul %7, %8, %cst_8 {dimension_numbers = #tpu.dot_dimension_numbers<[1], [0], [0], [1], [0, 0, 1, 1], [], []>} : vector<512x256xf32>, vector<256x128xf32>, vector<512x128xf32> -> vector<512x128xf32>
    %c0_9 = arith.constant 0 : index
    %c0_10 = arith.constant 0 : index
    %10 = vector.load %arg5[%c0_9, %c0_10] : memref<1x128xf32, #tpu.memory_space<vmem>>, vector<1x128xf32>
    %11 = vector.broadcast %10 : vector<1x128xf32> to vector<512x128xf32>
    %12 = arith.addf %9, %11 : vector<512x128xf32>
    %c0_11 = arith.constant 0 : index
    %c0_12 = arith.constant 0 : index
    %13 = vector.load %arg6[%c0_11, %c0_12] : memref<512x128xf32, #tpu.memory_space<vmem>>, vector<512x128xf32>
    tpu.vector_store %arg6[%c0_11, %c0_12], %12 {strides = array<i32>} : memref<512x128xf32, #tpu.memory_space<vmem>>, vector<512x128xf32>,
    return
  }
  func.func @transform_0(%arg0: i32) -> (i32, i32) {
    %c0_i32 = arith.constant 0 : i32
    %c0_i32_0 = arith.constant 0 : i32
    return %arg0, %c0_i32 : i32, i32
  }
  func.func @transform_1(%arg0: i32) -> (i32, i32) {
    %c0_i32 = arith.constant 0 : i32
    %c0_i32_0 = arith.constant 0 : i32
    %c0_i32_1 = arith.constant 0 : i32
    return %c0_i32, %c0_i32_0 : i32, i32
  }
  func.func @transform_2(%arg0: i32) -> (i32, i32) {
    %c0_i32 = arith.constant 0 : i32
    %c0_i32_0 = arith.constant 0 : i32
    %c0_i32_1 = arith.constant 0 : i32
    return %c0_i32, %c0_i32_0 : i32, i32
  }
  func.func @transform_3(%arg0: i32) -> (i32, i32) {
    %c0_i32 = arith.constant 0 : i32
    %c0_i32_0 = arith.constant 0 : i32
    %c0_i32_1 = arith.constant 0 : i32
    return %c0_i32, %c0_i32_0 : i32, i32
  }
  func.func @transform_4(%arg0: i32) -> (i32, i32) {
    %c0_i32 = arith.constant 0 : i32
    %c0_i32_0 = arith.constant 0 : i32
    %c0_i32_1 = arith.constant 0 : i32
    return %c0_i32, %c0_i32_0 : i32, i32
  }
  func.func @transform_5(%arg0: i32) -> (i32, i32) {
    %c0_i32 = arith.constant 0 : i32
    %c0_i32_0 = arith.constant 0 : i32
    return %arg0, %c0_i32 : i32, i32
  }
}

</mosaic_0001>

<llo_original>
// kernel: tpu_custom_call.1
$region0: #{tpu_custom_call.1}
  #allocation0 [shape = 'u32[]', space=smem, size = 0x4, offset = 0x4, fixed_abs, tag = 'smem constant byte address 0x4 - core index']
  #allocation1 [shape = 'u32[144,128]{1,0:T(1,128)}', space=vmem, size = 0x12000, scoped, tag = 'internal scratch']
  %s0 = inlined_call_operand.hbm [shape: f32[2048,128], index: 0, kind: input, shape index: {}]
  %s1 = inlined_call_operand.hbm [shape: f32[128,256], index: 1, kind: input, shape index: {}]
  %s2 = inlined_call_operand.vmem [shape: f32[1,256], index: 2, kind: input, shape index: {}]
  %s3 = inlined_call_operand.hbm [shape: f32[256,128], index: 3, kind: input, shape index: {}]
  %s4 = inlined_call_operand.vmem [shape: f32[1,128], index: 4, kind: input, shape index: {}]
  %s5 = inlined_call_operand.hbm [shape: f32[2048,128], index: 5, kind: output, shape index: {}]
  %s6 = sld [smem:[#allocation0]]
  $region65: #{tpu_custom_call.1} parent=0
    _
  %s8 = ssub.s32 1, %s6
  %s9 = scalar_select 0, %s8, %s6
  $region1: #{tpu_custom_call.1} parent=0
    #allocation2 [shape = 'u8[524288]{0}', space=vmem, size = 0x80000, scoped, tag = 'input window, operand 0']
    #allocation3 [shape = 's32[2]{0}', space=sflag, size = 0x8, scoped, tag = 'scoped memory for tpu_custom_call.1']
    #allocation4 [shape = 's32[2]{0}', space=sflag, size = 0x8, scoped, tag = 'scoped memory for tpu_custom_call.1']
    #allocation5 [shape = 'u8[131072]{0}', space=vmem, size = 0x20000, scoped, tag = 'input window, operand 1, single buffered']
    #allocation6 [shape = 's32[1]{0}', space=sflag, size = 0x4, scoped, tag = 'scoped memory for tpu_custom_call.1']
    #allocation7 [shape = 'u8[131072]{0}', space=vmem, size = 0x20000, scoped, tag = 'input window, operand 3, single buffered']
    #allocation8 [shape = 'u8[524288]{0}', space=vmem, size = 0x80000, scoped, tag = 'output window, operand 0']
    %10 = vsyncpa [#allocation3], 0
    %s11 = scalar_lea.sflag [#allocation3], 1
    %12 = vsyncpa %s11, 0
    %13 = vsyncpa [#allocation6], 0
    %14 = vsyncpa [#allocation4], 0
    %s15 = scalar_lea.sflag [#allocation4], 1
    %16 = vsyncpa %s15, 0
    loop: start=0, step=1, limit=6
    $region2: #{tpu_custom_call.1} parent=1 // loop_pre_header
      _
    $region3: #{tpu_custom_call.1} parent=1 // loop_header
      %s18 = sphi 0, %s22
      %p19 = scmp.ge.s32.totalorder %s18, 6
      %s28 = sphi 0, %s30
      %s31 = sphi 0, %s28
      %s32 = sphi 0, %s31
      %s48 = sphi 0, %s32
      %s52 = sphi 0, %s52
      %s54 = sphi 0, %s52
      %s55 = sphi 0, %s54
      %s69 = sphi 0, %s55
      %s73 = sphi 0, %s73
      %s75 = sphi 0, %s73
      %s76 = sphi 0, %s75
      %s90 = sphi 0, %s76
      %s94 = sphi 0, %s94
      %s96 = sphi 0, %s94
      %s97 = sphi 0, %s96
      %s111 = sphi 0, %s97
      %s115 = sphi 0, %s115
      %s117 = sphi 0, %s115
      %s118 = sphi 0, %s117
      %s132 = sphi 0, %s118
      %s138 = sphi 0, %s140
      %s141 = sphi 0, %s138
      %s142 = sphi 0, %s141
      %s158 = sphi 0, %s142
    $region4: #{tpu_custom_call.1} parent=1 // loop_header_branch
      %21 = sbr.rel (%p19) target = $region8
    $region5: #{tpu_custom_call.1} parent=1 // loop_body
      %s23 = ssub.s32 %s18, 1
      %s24 = ssub.s32 %s18, 2
      %s25 = sadd.s32 %s18, 1
      %s26 = ssub.s32 %s18, %s25
      %p27 = scmp.eq.s32.totalorder %s26, 0
      %s29 = sadd.s32 %s28, 1
      %s30 = scalar_select %p27, %s28, %s29
      %p33 = pneg %p27
      %p34 = scmp.eq.s32.totalorder %s18, 3
      %p35 = por %p33, %p34
      %p36 = scmp.ne.s32.totalorder %s28, %s31
      %p37 = scmp.eq.s32.totalorder %s18, 0
      %p38 = por %p36, %p37
      %p39 = scmp.ne.s32.totalorder %s28, %s31
      %p40 = scmp.eq.s32.totalorder %s23, 3
      %p41 = por %p39, %p40
      %p42 = scmp.ne.s32.totalorder %s31, %s32
      %p43 = scmp.eq.s32.totalorder %s23, 0
      %p44 = por %p42, %p43
      %p45 = scmp.ne.s32.totalorder %s31, %s32
      %p46 = scmp.eq.s32.totalorder %s24, 3
      %p47 = por %p45, %p46
      %p49 = scmp.ne.s32.totalorder %s32, %s48
      %p50 = scmp.eq.s32.totalorder %s24, 0
      %p51 = por %p49, %p50
      %s53 = sadd.s32 %s52, 1
      %p56 = scmp.eq.s32.totalorder %s18, 3
      %p57 = scmp.ne.s32.totalorder %s52, %s54
      %p58 = scmp.eq.s32.totalorder %s18, 0
      %p59 = por %p57, %p58
      %p60 = scmp.ne.s32.totalorder %s52, %s54
      %p61 = scmp.eq.s32.totalorder %s23, 3
      %p62 = por %p60, %p61
      %p63 = scmp.ne.s32.totalorder %s54, %s55
      %p64 = scmp.eq.s32.totalorder %s23, 0
      %p65 = por %p63, %p64
      %p66 = scmp.ne.s32.totalorder %s54, %s55
      %p67 = scmp.eq.s32.totalorder %s24, 3
      %p68 = por %p66, %p67
      %p70 = scmp.ne.s32.totalorder %s55, %s69
      %p71 = scmp.eq.s32.totalorder %s24, 0
      %p72 = por %p70, %p71
      %s74 = sadd.s32 %s73, 1
      %p77 = scmp.eq.s32.totalorder %s18, 3
      %p78 = scmp.ne.s32.totalorder %s73, %s75
      %p79 = scmp.eq.s32.totalorder %s18, 0
      %p80 = por %p78, %p79
      %p81 = scmp.ne.s32.totalorder %s73, %s75
      %p82 = scmp.eq.s32.totalorder %s23, 3
      %p83 = por %p81, %p82
      %p84 = scmp.ne.s32.totalorder %s75, %s76
      %p85 = scmp.eq.s32.totalorder %s23, 0
      %p86 = por %p84, %p85
      %p87 = scmp.ne.s32.totalorder %s75, %s76
      %p88 = scmp.eq.s32.totalorder %s24, 3
      %p89 = por %p87, %p88
      %p91 = scmp.ne.s32.totalorder %s76, %s90
      %p92 = scmp.eq.s32.totalorder %s24, 0
      %p93 = por %p91, %p92
      %s95 = sadd.s32 %s94, 1
      %p98 = scmp.eq.s32.totalorder %s18, 3
      %p99 = scmp.ne.s32.totalorder %s94, %s96
      %p100 = scmp.eq.s32.totalorder %s18, 0
      %p101 = por %p99, %p100
      %p102 = scmp.ne.s32.totalorder %s94, %s96
      %p103 = scmp.eq.s32.totalorder %s23, 3
      %p104 = por %p102, %p103
      %p105 = scmp.ne.s32.totalorder %s96, %s97
      %p106 = scmp.eq.s32.totalorder %s23, 0
      %p107 = por %p105, %p106
      %p108 = scmp.ne.s32.totalorder %s96, %s97
      %p109 = scmp.eq.s32.totalorder %s24, 3
      %p110 = por %p108, %p109
      %p112 = scmp.ne.s32.totalorder %s97, %s111
      %p113 = scmp.eq.s32.totalorder %s24, 0
      %p114 = por %p112, %p113
      %s116 = sadd.s32 %s115, 1
      %p119 = scmp.eq.s32.totalorder %s18, 3
      %p120 = scmp.ne.s32.totalorder %s115, %s117
      %p121 = scmp.eq.s32.totalorder %s18, 0
      %p122 = por %p120, %p121
      %p123 = scmp.ne.s32.totalorder %s115, %s117
      %p124 = scmp.eq.s32.totalorder %s23, 3
      %p125 = por %p123, %p124
      %p126 = scmp.ne.s32.totalorder %s117, %s118
      %p127 = scmp.eq.s32.totalorder %s23, 0
      %p128 = por %p126, %p127
      %p129 = scmp.ne.s32.totalorder %s117, %s118
      %p130 = scmp.eq.s32.totalorder %s24, 3
      %p131 = por %p129, %p130
      %p133 = scmp.ne.s32.totalorder %s118, %s132
      %p134 = scmp.eq.s32.totalorder %s24, 0
      %p135 = por %p133, %p134
      %s136 = ssub.s32 %s18, %s25
      %p137 = scmp.eq.s32.totalorder %s136, 0
      %s139 = sadd.s32 %s138, 1
      %s140 = scalar_select %p137, %s138, %s139
      %p143 = pneg %p137
      %p144 = scmp.eq.s32.totalorder %s18, 3
      %p145 = por %p143, %p144
      %p146 = scmp.ne.s32.totalorder %s138, %s141
      %p147 = scmp.eq.s32.totalorder %s18, 0
      %p148 = por %p146, %p147
      %p149 = scmp.ne.s32.totalorder %s138, %s141
      %p150 = scmp.eq.s32.totalorder %s23, 3
      %p151 = por %p149, %p150
      %p152 = scmp.ne.s32.totalorder %s141, %s142
      %p153 = scmp.eq.s32.totalorder %s23, 0
      %p154 = por %p152, %p153
      %p155 = scmp.ne.s32.totalorder %s141, %s142
      %p156 = scmp.eq.s32.totalorder %s24, 3
      %p157 = por %p155, %p156
      %p159 = scmp.ne.s32.totalorder %s142, %s158
      %p160 = scmp.eq.s32.totalorder %s24, 0
      %p161 = por %p159, %p160
      %p162 = scmp.le.s32.totalorder 1, %s18
      %p163 = scmp.lt.s32.totalorder %s18, 5
      %p164 = pnand %p162, %p163
      %p165 = pneg %p164
      // Predicated region
      $region9: #{tpu_custom_call.1} parent=5 // pred_check
        _
      $region10: #{tpu_custom_call.1} parent=5 // pred_check_branch
        %167 = sbr.rel (%p164) target = $region12
      $region11: #{tpu_custom_call.1} parent=5 // pred_region
        %s168 = ssub.s32 %s18, 1
        // Predicated region
        $region13: #{tpu_custom_call.1} parent=11 // pred_check
          %p169 = pneg %p65
        $region14: #{tpu_custom_call.1} parent=11 // pred_check_branch
          %171 = sbr.rel (%p169) target = $region16
        $region15: #{tpu_custom_call.1} parent=11 // pred_region
          %s173 = ssub.s32 4096, 4096
          %174 = vsyncadd [#allocation6], %s173
          %s175 = sshll.u32 [#allocation5], 4
          %s176 = int_to_ptr.vmem [resolvable:$true] %s175
          %181 = dma.hbm_to_vmem [thread:$0]  %s1, 4096, %s176, [#allocation6], 256, 256, 16
        $region16: #{tpu_custom_call.1} parent=11 // pred_fallthru
          _
        // Predicated region
        $region17: #{tpu_custom_call.1} parent=11 // pred_check
          %p182 = pneg %p86
        $region18: #{tpu_custom_call.1} parent=11 // pred_check_branch
          %184 = sbr.rel (%p182) target = $region20
        $region19: #{tpu_custom_call.1} parent=11 // pred_region
          _
        $region20: #{tpu_custom_call.1} parent=11 // pred_fallthru
          _
        // Predicated region
        $region21: #{tpu_custom_call.1} parent=11 // pred_check
          %p185 = pneg %p107
        $region22: #{tpu_custom_call.1} parent=11 // pred_check_branch
          %187 = sbr.rel (%p185) target = $region24
        $region23: #{tpu_custom_call.1} parent=11 // pred_region
          %s189 = ssub.s32 4096, 4096
          %190 = vsyncadd [#allocation6], %s189
          %s191 = sshll.u32 [#allocation7], 4
          %s192 = int_to_ptr.vmem [resolvable:$true] %s191
          %197 = dma.hbm_to_vmem [thread:$0]  %s3, 4096, %s192, [#allocation6], 128, 128, 8
        $region24: #{tpu_custom_call.1} parent=11 // pred_fallthru
          _
        // Predicated region
        $region25: #{tpu_custom_call.1} parent=11 // pred_check
          %p198 = pneg %p128
        $region26: #{tpu_custom_call.1} parent=11 // pred_check_branch
          %200 = sbr.rel (%p198) target = $region28
        $region27: #{tpu_custom_call.1} parent=11 // pred_region
          _
        $region28: #{tpu_custom_call.1} parent=11 // pred_fallthru
          _
      $region12: #{tpu_custom_call.1} parent=5 // pred_fallthru
        _
      %p201 = scmp.lt.s32.totalorder %s18, 4
      // Predicated region
      $region29: #{tpu_custom_call.1} parent=5 // pred_check
        %p202 = pneg %p201
      $region30: #{tpu_custom_call.1} parent=5 // pred_check_branch
        %204 = sbr.rel (%p202) target = $region32
      $region31: #{tpu_custom_call.1} parent=5 // pred_region
        // Predicated region
        $region33: #{tpu_custom_call.1} parent=31 // pred_check
          %p205 = pneg %p38
        $region34: #{tpu_custom_call.1} parent=31 // pred_check_branch
          %207 = sbr.rel (%p205) target = $region36
        $region35: #{tpu_custom_call.1} parent=31 // pred_region
          %s208 = sand.u32 %s28, 1
          %s209 = scalar_lea.sflag [#allocation3], %s208
          %s210 = sand.u32 %s28, 1
          %s211 = smul.addr %s210, 512
          %s212 = scalar_lea.vmem [#allocation2], %s211
          %s213 = smul.u32 64, %s18
          %s215 = ssub.s32 8192, 8192
          %216 = vsyncadd %s209, %s215
          %s217 = smul.addr %s213, 128
          %s218 = scalar_lea.hbm %s0, %s217
          %s219 = sshll.u32 %s212, 4
          %s220 = int_to_ptr.vmem [resolvable:$true] %s219
          %225 = dma.hbm_to_vmem [thread:$0]  %s218, 8192, %s220, %s209, 128, 128, 8
        $region36: #{tpu_custom_call.1} parent=31 // pred_fallthru
          _
      $region32: #{tpu_custom_call.1} parent=5 // pred_fallthru
        _
      %p226 = scmp.le.s32.totalorder 1, %s18
      %p227 = scmp.lt.s32.totalorder %s18, 5
      %p228 = pnand %p226, %p227
      %p229 = pneg %p228
      // Predicated region
      $region37: #{tpu_custom_call.1} parent=5 // pred_check
        _
      $region38: #{tpu_custom_call.1} parent=5 // pred_check_branch
        %231 = sbr.rel (%p228) target = $region40
      $region39: #{tpu_custom_call.1} parent=5 // pred_region
        %s232 = ssub.s32 %s18, 1
        %s233 = sand.u32 %s31, 1
        %s234 = scalar_lea.sflag [#allocation3], %s233
        %s235 = sand.u32 %s31, 1
        %s236 = smul.addr %s235, 512
        %s237 = scalar_lea.vmem [#allocation2], %s236
        // Predicated region
        $region41: #{tpu_custom_call.1} parent=39 // pred_check
          %p238 = pneg %p44
        $region42: #{tpu_custom_call.1} parent=39 // pred_check_branch
          %240 = sbr.rel (%p238) target = $region44
        $region43: #{tpu_custom_call.1} parent=39 // pred_region
          %241 = dma.done %s234, 8192
        $region44: #{tpu_custom_call.1} parent=39 // pred_fallthru
          _
        // Predicated region
        $region45: #{tpu_custom_call.1} parent=39 // pred_check
          %p242 = pneg %p65
        $region46: #{tpu_custom_call.1} parent=39 // pred_check_branch
          %244 = sbr.rel (%p242) target = $region48
        $region47: #{tpu_custom_call.1} parent=39 // pred_region
          %245 = dma.done [#allocation6], 4096
        $region48: #{tpu_custom_call.1} parent=39 // pred_fallthru
          _
        // Predicated region
        $region49: #{tpu_custom_call.1} parent=39 // pred_check
          %p246 = pneg %p107
        $region50: #{tpu_custom_call.1} parent=39 // pred_check_branch
          %248 = sbr.rel (%p246) target = $region52
        $region51: #{tpu_custom_call.1} parent=39 // pred_region
          %249 = dma.done [#allocation6], 4096
        $region52: #{tpu_custom_call.1} parent=39 // pred_fallthru
          _
        %s250 = sand.u32 %s31, 1
        %s251 = scalar_lea.sflag [#allocation3], %s250
        %s252 = sand.u32 %s31, 1
        %s253 = smul.addr %s252, 512
        %s254 = scalar_lea.vmem [#allocation2], %s253
        %p255 = pneg %p44
        %p256 = pneg %p41
        %p257 = pneg %p65
        %p258 = pneg %p62
        %p259 = pneg %p86
        %p260 = pneg %p83
        %p261 = pneg %p107
        %p262 = pneg %p104
        %p263 = pneg %p128
        %p264 = pneg %p125
        %p265 = pneg %p154
        %p266 = pneg %p151
        %s267 = sand.u32 %s141, 1
        %s268 = scalar_lea.sflag [#allocation4], %s267
        %s269 = sand.u32 %s141, 1
        %s270 = smul.addr %s269, 512
        %s271 = scalar_lea.vmem [#allocation8], %s270
        %s272 = smul.u32 64, %s23
        %s273 = smul.u32 64, %s23
        %v274 = vld [vmem:[%s237] sm:$0xff]
        %v275 = vld [vmem:[%s237 + $0x8] sm:$0xff]
        %v276 = vld [vmem:[%s237 + $0x10] sm:$0xff]
        %v277 = vld [vmem:[%s237 + $0x18] sm:$0xff]
        %v278 = vld [vmem:[%s237 + $0x20] sm:$0xff]
        %v279 = vld [vmem:[%s237 + $0x28] sm:$0xff]
        %v280 = vld [vmem:[%s237 + $0x30] sm:$0xff]
        %v281 = vld [vmem:[%s237 + $0x38] sm:$0xff]
        %v282 = vld [vmem:[%s237 + $0x40] sm:$0xff]
        %v283 = vld [vmem:[%s237 + $0x48] sm:$0xff]
        %v284 = vld [vmem:[%s237 + $0x50] sm:$0xff]
        %v285 = vld [vmem:[%s237 + $0x58] sm:$0xff]
        %v286 = vld [vmem:[%s237 + $0x60] sm:$0xff]
        %v287 = vld [vmem:[%s237 + $0x68] sm:$0xff]
        %v288 = vld [vmem:[%s237 + $0x70] sm:$0xff]
        %v289 = vld [vmem:[%s237 + $0x78] sm:$0xff]
        %v290 = vld [vmem:[%s237 + $0x80] sm:$0xff]
        %v291 = vld [vmem:[%s237 + $0x88] sm:$0xff]
        %v292 = vld [vmem:[%s237 + $0x90] sm:$0xff]
        %v293 = vld [vmem:[%s237 + $0x98] sm:$0xff]
        %v294 = vld [vmem:[%s237 + $0xa0] sm:$0xff]
        %v295 = vld [vmem:[%s237 + $0xa8] sm:$0xff]
        %v296 = vld [vmem:[%s237 + $0xb0] sm:$0xff]
        %v297 = vld [vmem:[%s237 + $0xb8] sm:$0xff]
        %v298 = vld [vmem:[%s237 + $0xc0] sm:$0xff]
        %v299 = vld [vmem:[%s237 + $0xc8] sm:$0xff]
        %v300 = vld [vmem:[%s237 + $0xd0] sm:$0xff]
        %v301 = vld [vmem:[%s237 + $0xd8] sm:$0xff]
        %v302 = vld [vmem:[%s237 + $0xe0] sm:$0xff]
        %v303 = vld [vmem:[%s237 + $0xe8] sm:$0xff]
        %v304 = vld [vmem:[%s237 + $0xf0] sm:$0xff]
        %v305 = vld [vmem:[%s237 + $0xf8] sm:$0xff]
        %v306 = vld [vmem:[%s237 + $0x100] sm:$0xff]
        %v307 = vld [vmem:[%s237 + $0x108] sm:$0xff]
        %v308 = vld [vmem:[%s237 + $0x110] sm:$0xff]
        %v309 = vld [vmem:[%s237 + $0x118] sm:$0xff]
        %v310 = vld [vmem:[%s237 + $0x120] sm:$0xff]
        %v311 = vld [vmem:[%s237 + $0x128] sm:$0xff]
        %v312 = vld [vmem:[%s237 + $0x130] sm:$0xff]
        %v313 = vld [vmem:[%s237 + $0x138] sm:$0xff]
        %v314 = vld [vmem:[%s237 + $0x140] sm:$0xff]
        %v315 = vld [vmem:[%s237 + $0x148] sm:$0xff]
        %v316 = vld [vmem:[%s237 + $0x150] sm:$0xff]
        %v317 = vld [vmem:[%s237 + $0x158] sm:$0xff]
        %v318 = vld [vmem:[%s237 + $0x160] sm:$0xff]
        %v319 = vld [vmem:[%s237 + $0x168] sm:$0xff]
        %v320 = vld [vmem:[%s237 + $0x170] sm:$0xff]
        %v321 = vld [vmem:[%s237 + $0x178] sm:$0xff]
        %v322 = vld [vmem:[%s237 + $0x180] sm:$0xff]
        %v323 = vld [vmem:[%s237 + $0x188] sm:$0xff]
        %v324 = vld [vmem:[%s237 + $0x190] sm:$0xff]
        %v325 = vld [vmem:[%s237 + $0x198] sm:$0xff]
        %v326 = vld [vmem:[%s237 + $0x1a0] sm:$0xff]
        %v327 = vld [vmem:[%s237 + $0x1a8] sm:$0xff]
        %v328 = vld [vmem:[%s237 + $0x1b0] sm:$0xff]
        %v329 = vld [vmem:[%s237 + $0x1b8] sm:$0xff]
        %v330 = vld [vmem:[%s237 + $0x1c0] sm:$0xff]
        %v331 = vld [vmem:[%s237 + $0x1c8] sm:$0xff]
        %v332 = vld [vmem:[%s237 + $0x1d0] sm:$0xff]
        %v333 = vld [vmem:[%s237 + $0x1d8] sm:$0xff]
        %v334 = vld [vmem:[%s237 + $0x1e0] sm:$0xff]
        %v335 = vld [vmem:[%s237 + $0x1e8] sm:$0xff]
        %v336 = vld [vmem:[%s237 + $0x1f0] sm:$0xff]
        %v337 = vld [vmem:[%s237 + $0x1f8] sm:$0xff]
        %v338 = vld [vmem:[#allocation5] sm:$0xff]
        %v339 = vld [vmem:[#allocation5 + $0x8] sm:$0xff]
        %v340 = vld [vmem:[#allocation5 + $0x10] sm:$0xff]
        %v341 = vld [vmem:[#allocation5 + $0x18] sm:$0xff]
        %v342 = vld [vmem:[#allocation5 + $0x20] sm:$0xff]
        %v343 = vld [vmem:[#allocation5 + $0x28] sm:$0xff]
        %v344 = vld [vmem:[#allocation5 + $0x30] sm:$0xff]
        %v345 = vld [vmem:[#allocation5 + $0x38] sm:$0xff]
        %v346 = vld [vmem:[#allocation5 + $0x40] sm:$0xff]
        %v347 = vld [vmem:[#allocation5 + $0x48] sm:$0xff]
        %v348 = vld [vmem:[#allocation5 + $0x50] sm:$0xff]
        %v349 = vld [vmem:[#allocation5 + $0x58] sm:$0xff]
        %v350 = vld [vmem:[#allocation5 + $0x60] sm:$0xff]
        %v351 = vld [vmem:[#allocation5 + $0x68] sm:$0xff]
        %v352 = vld [vmem:[#allocation5 + $0x70] sm:$0xff]
        %v353 = vld [vmem:[#allocation5 + $0x78] sm:$0xff]
        %v354 = vld [vmem:[#allocation5 + $0x80] sm:$0xff]
        %v355 = vld [vmem:[#allocation5 + $0x88] sm:$0xff]
        %v356 = vld [vmem:[#allocation5 + $0x90] sm:$0xff]
        %v357 = vld [vmem:[#allocation5 + $0x98] sm:$0xff]
        %v358 = vld [vmem:[#allocation5 + $0xa0] sm:$0xff]
        %v359 = vld [vmem:[#allocation5 + $0xa8] sm:$0xff]
        %v360 = vld [vmem:[#allocation5 + $0xb0] sm:$0xff]
        %v361 = vld [vmem:[#allocation5 + $0xb8] sm:$0xff]
        %v362 = vld [vmem:[#allocation5 + $0xc0] sm:$0xff]
        %v363 = vld [vmem:[#allocation5 + $0xc8] sm:$0xff]
        %v364 = vld [vmem:[#allocation5 + $0xd0] sm:$0xff]
        %v365 = vld [vmem:[#allocation5 + $0xd8] sm:$0xff]
        %v366 = vld [vmem:[#allocation5 + $0xe0] sm:$0xff]
        %v367 = vld [vmem:[#allocation5 + $0xe8] sm:$0xff]
        %v368 = vld [vmem:[#allocation5 + $0xf0] sm:$0xff]
        %v369 = vld [vmem:[#allocation5 + $0xf8] sm:$0xff]
        %v370 = vld [vmem:[%s2] sm:$0x3]
        %v372 = vlaneseq
        %v373 = vshrl.u32 %v372, 7
        %v374 = vsub.s32 0, %v373
        %v375 = vrot.slane %v370, %v374
        %v376 = vlaneseq
        %v377 = vshrl.u32 %v376, 7
        %v378 = vsub.s32 1, %v377
        %v379 = vrot.slane %v370, %v378
        %382 = vmatprep.subr.mxu0 %v369
        %383 = vmatpush1.msra.mxu0 %v368
        %384 = vmatprep.subr.mxu0 %v367
        %385 = vmatpush1.msra.mxu0 %v366
        %386 = vmatprep.subr.mxu0 %v365
        %387 = vmatpush1.msra.mxu0 %v364
        %388 = vmatprep.subr.mxu0 %v363
        %389 = vmatpush1.msra.mxu0 %v362
        %390 = vmatprep.subr.mxu0 %v361
        %391 = vmatpush1.msra.mxu0 %v360
        %392 = vmatprep.subr.mxu0 %v359
        %393 = vmatpush1.msra.mxu0 %v358
        %394 = vmatprep.subr.mxu0 %v357
        %395 = vmatpush1.msra.mxu0 %v356
        %396 = vmatprep.subr.mxu0 %v355
        %397 = vmatpush1.msra.mxu0 %v354
        %398 = vmatprep.subr.mxu0 %v353
        %399 = vmatpush1.msra.mxu0 %v352
        %400 = vmatprep.subr.mxu0 %v351
        %401 = vmatpush1.msra.mxu0 %v350
        %402 = vmatprep.subr.mxu0 %v349
        %403 = vmatpush1.msra.mxu0 %v348
        %404 = vmatprep.subr.mxu0 %v347
        %405 = vmatpush1.msra.mxu0 %v346
        %406 = vmatprep.subr.mxu0 %v345
        %407 = vmatpush1.msra.mxu0 %v344
        %408 = vmatprep.subr.mxu0 %v343
        %409 = vmatpush1.msra.mxu0 %v342
        %410 = vmatprep.subr.mxu0 %v341
        %411 = vmatpush1.msra.mxu0 %v340
        %412 = vmatprep.subr.mxu0 %v339
        %413 = vmatpush1.msra.mxu0 %v338
        %414 = vmatprep.subr.mxu0 0.0
        %415 = vmatpush2.msra.mxu0 0.0
        %416 = vmatprep.subr.mxu0 0.0
        %417 = vmatpush2.msra.mxu0 0.0
        %418 = vmatprep.subr.mxu0 0.0
        %419 = vmatpush2.msra.mxu0 0.0
        %420 = vmatprep.subr.mxu0 0.0
        %421 = vmatpush2.msra.mxu0 0.0
        %422 = vmatprep.subr.mxu0 0.0
        %423 = vmatpush2.msra.mxu0 0.0
        %424 = vmatprep.subr.mxu0 0.0
        %425 = vmatpush2.msra.mxu0 0.0
        %426 = vmatprep.subr.mxu0 0.0
        %427 = vmatpush2.msra.mxu0 0.0
        %428 = vmatprep.subr.mxu0 0.0
        %429 = vmatpush2.msra.mxu0 0.0
        %430 = vmatprep.subr.mxu0 0.0
        %431 = vmatpush2.msra.mxu0 0.0
        %432 = vmatprep.subr.mxu0 0.0
        %433 = vmatpush2.msra.mxu0 0.0
        %434 = vmatprep.subr.mxu0 0.0
        %435 = vmatpush2.msra.mxu0 0.0
        %436 = vmatprep.subr.mxu0 0.0
        %437 = vmatpush2.msra.mxu0 0.0
        %438 = vmatprep.subr.mxu0 0.0
        %439 = vmatpush2.msra.mxu0 0.0
        %440 = vmatprep.subr.mxu0 0.0
        %441 = vmatpush2.msra.mxu0 0.0
        %442 = vmatprep.subr.mxu0 0.0
        %443 = vmatpush2.msra.mxu0 0.0
        %444 = vmatprep.subr.mxu0 0.0
        %445 = vmatpush2.msra.mxu0 0.0
        %446 = vmatprep.mubr.f32.mxu0 0.0
        %447 = vmatmul.mubr.f32.gmra.mxu0 %v274
        %v448 = vpop.f32.mrf.mxu0
        %v449 = vadd.f32 %v375, %v448
        %v450 = vpop.f32.mrf.mxu0
        %v451 = vadd.f32 %v379, %v450
        %452 = vmatprep.mubr.f32.mxu0 0.0
        %453 = vmatmul.mubr.f32.gmra.mxu0 %v275
        %v454 = vpop.f32.mrf.mxu0
        %v455 = vadd.f32 %v375, %v454
        %v456 = vpop.f32.mrf.mxu0
        %v457 = vadd.f32 %v379, %v456
        %458 = vmatprep.mubr.f32.mxu0 0.0
        %459 = vmatmul.mubr.f32.gmra.mxu0 %v276
        %v460 = vpop.f32.mrf.mxu0
        %v461 = vadd.f32 %v375, %v460
        %v462 = vpop.f32.mrf.mxu0
        %v463 = vadd.f32 %v379, %v462
        %464 = vmatprep.mubr.f32.mxu0 0.0
        %465 = vmatmul.mubr.f32.gmra.mxu0 %v277
        %v466 = vpop.f32.mrf.mxu0
        %v467 = vadd.f32 %v375, %v466
        %v468 = vpop.f32.mrf.mxu0
        %v469 = vadd.f32 %v379, %v468
        %470 = vmatprep.mubr.f32.mxu0 0.0
        %471 = vmatmul.mubr.f32.gmra.mxu0 %v278
        %v472 = vpop.f32.mrf.mxu0
        %v473 = vadd.f32 %v375, %v472
        %v474 = vpop.f32.mrf.mxu0
        %v475 = vadd.f32 %v379, %v474
        %476 = vmatprep.mubr.f32.mxu0 0.0
        %477 = vmatmul.mubr.f32.gmra.mxu0 %v279
        %v478 = vpop.f32.mrf.mxu0
        %v479 = vadd.f32 %v375, %v478
        %v480 = vpop.f32.mrf.mxu0
        %v481 = vadd.f32 %v379, %v480
        %482 = vmatprep.mubr.f32.mxu0 0.0
        %483 = vmatmul.mubr.f32.gmra.mxu0 %v280
        %v484 = vpop.f32.mrf.mxu0
        %v485 = vadd.f32 %v375, %v484
        %v486 = vpop.f32.mrf.mxu0
        %v487 = vadd.f32 %v379, %v486
        %488 = vmatprep.mubr.f32.mxu0 0.0
        %489 = vmatmul.mubr.f32.gmra.mxu0 %v281
        %v490 = vpop.f32.mrf.mxu0
        %v491 = vadd.f32 %v375, %v490
        %v492 = vpop.f32.mrf.mxu0
        %v493 = vadd.f32 %v379, %v492
        %494 = vmatprep.mubr.f32.mxu0 0.0
        %495 = vmatmul.mubr.f32.gmra.mxu0 %v282
        %v496 = vpop.f32.mrf.mxu0
        %v497 = vadd.f32 %v375, %v496
        %v498 = vpop.f32.mrf.mxu0
        %v499 = vadd.f32 %v379, %v498
        %500 = vmatprep.mubr.f32.mxu0 0.0
        %501 = vmatmul.mubr.f32.gmra.mxu0 %v283
        %v502 = vpop.f32.mrf.mxu0
        %v503 = vadd.f32 %v375, %v502
        %v504 = vpop.f32.mrf.mxu0
        %v505 = vadd.f32 %v379, %v504
        %506 = vmatprep.mubr.f32.mxu0 0.0
        %507 = vmatmul.mubr.f32.gmra.mxu0 %v284
        %v508 = vpop.f32.mrf.mxu0
        %v509 = vadd.f32 %v375, %v508
        %v510 = vpop.f32.mrf.mxu0
        %v511 = vadd.f32 %v379, %v510
        %512 = vmatprep.mubr.f32.mxu0 0.0
        %513 = vmatmul.mubr.f32.gmra.mxu0 %v285
        %v514 = vpop.f32.mrf.mxu0
        %v515 = vadd.f32 %v375, %v514
        %v516 = vpop.f32.mrf.mxu0
        %v517 = vadd.f32 %v379, %v516
        %518 = vmatprep.mubr.f32.mxu0 0.0
        %519 = vmatmul.mubr.f32.gmra.mxu0 %v286
        %v520 = vpop.f32.mrf.mxu0
        %v521 = vadd.f32 %v375, %v520
        %v522 = vpop.f32.mrf.mxu0
        %v523 = vadd.f32 %v379, %v522
        %524 = vmatprep.mubr.f32.mxu0 0.0
        %525 = vmatmul.mubr.f32.gmra.mxu0 %v287
        %v526 = vpop.f32.mrf.mxu0
        %v527 = vadd.f32 %v375, %v526
        %v528 = vpop.f32.mrf.mxu0
        %v529 = vadd.f32 %v379, %v528
        %530 = vmatprep.mubr.f32.mxu0 0.0
        %531 = vmatmul.mubr.f32.gmra.mxu0 %v288
        %v532 = vpop.f32.mrf.mxu0
        %v533 = vadd.f32 %v375, %v532
        %v534 = vpop.f32.mrf.mxu0
        %v535 = vadd.f32 %v379, %v534
        %536 = vmatprep.mubr.f32.mxu0 0.0
        %537 = vmatmul.mubr.f32.gmra.mxu0 %v289
        %v538 = vpop.f32.mrf.mxu0
        %v539 = vadd.f32 %v375, %v538
        %v540 = vpop.f32.mrf.mxu0
        %v541 = vadd.f32 %v379, %v540
        %542 = vmatprep.mubr.f32.mxu0 0.0
        %543 = vmatmul.mubr.f32.gmra.mxu0 %v290
        %v544 = vpop.f32.mrf.mxu0
        %v545 = vadd.f32 %v375, %v544
        %v546 = vpop.f32.mrf.mxu0
        %v547 = vadd.f32 %v379, %v546
        %548 = vmatprep.mubr.f32.mxu0 0.0
        %549 = vmatmul.mubr.f32.gmra.mxu0 %v291
        %v550 = vpop.f32.mrf.mxu0
        %v551 = vadd.f32 %v375, %v550
        %v552 = vpop.f32.mrf.mxu0
        %v553 = vadd.f32 %v379, %v552
        %554 = vmatprep.mubr.f32.mxu0 0.0
        %555 = vmatmul.mubr.f32.gmra.mxu0 %v292
        %v556 = vpop.f32.mrf.mxu0
        %v557 = vadd.f32 %v375, %v556
        %v558 = vpop.f32.mrf.mxu0
        %v559 = vadd.f32 %v379, %v558
        %560 = vmatprep.mubr.f32.mxu0 0.0
        %561 = vmatmul.mubr.f32.gmra.mxu0 %v293
        %v562 = vpop.f32.mrf.mxu0
        %v563 = vadd.f32 %v375, %v562
        %v564 = vpop.f32.mrf.mxu0
        %v565 = vadd.f32 %v379, %v564
        %566 = vmatprep.mubr.f32.mxu0 0.0
        %567 = vmatmul.mubr.f32.gmra.mxu0 %v294
        %v568 = vpop.f32.mrf.mxu0
        %v569 = vadd.f32 %v375, %v568
        %v570 = vpop.f32.mrf.mxu0
        %v571 = vadd.f32 %v379, %v570
        %572 = vmatprep.mubr.f32.mxu0 0.0
        %573 = vmatmul.mubr.f32.gmra.mxu0 %v295
        %v574 = vpop.f32.mrf.mxu0
        %v575 = vadd.f32 %v375, %v574
        %v576 = vpop.f32.mrf.mxu0
        %v577 = vadd.f32 %v379, %v576
        %578 = vmatprep.mubr.f32.mxu0 0.0
        %579 = vmatmul.mubr.f32.gmra.mxu0 %v296
        %v580 = vpop.f32.mrf.mxu0
        %v581 = vadd.f32 %v375, %v580
        %v582 = vpop.f32.mrf.mxu0
        %v583 = vadd.f32 %v379, %v582
        %584 = vmatprep.mubr.f32.mxu0 0.0
        %585 = vmatmul.mubr.f32.gmra.mxu0 %v297
        %v586 = vpop.f32.mrf.mxu0
        %v587 = vadd.f32 %v375, %v586
        %v588 = vpop.f32.mrf.mxu0
        %v589 = vadd.f32 %v379, %v588
        %590 = vmatprep.mubr.f32.mxu0 0.0
        %591 = vmatmul.mubr.f32.gmra.mxu0 %v298
        %v592 = vpop.f32.mrf.mxu0
        %v593 = vadd.f32 %v375, %v592
        %v594 = vpop.f32.mrf.mxu0
        %v595 = vadd.f32 %v379, %v594
        %596 = vmatprep.mubr.f32.mxu0 0.0
        %597 = vmatmul.mubr.f32.gmra.mxu0 %v299
        %v598 = vpop.f32.mrf.mxu0
        %v599 = vadd.f32 %v375, %v598
        %v600 = vpop.f32.mrf.mxu0
        %v601 = vadd.f32 %v379, %v600
        %602 = vmatprep.mubr.f32.mxu0 0.0
        %603 = vmatmul.mubr.f32.gmra.mxu0 %v300
        %v604 = vpop.f32.mrf.mxu0
        %v605 = vadd.f32 %v375, %v604
        %v606 = vpop.f32.mrf.mxu0
        %v607 = vadd.f32 %v379, %v606
        %608 = vmatprep.mubr.f32.mxu0 0.0
        %609 = vmatmul.mubr.f32.gmra.mxu0 %v301
        %v610 = vpop.f32.mrf.mxu0
        %v611 = vadd.f32 %v375, %v610
        %v612 = vpop.f32.mrf.mxu0
        %v613 = vadd.f32 %v379, %v612
        %614 = vmatprep.mubr.f32.mxu0 0.0
        %615 = vmatmul.mubr.f32.gmra.mxu0 %v302
        %v616 = vpop.f32.mrf.mxu0
        %v617 = vadd.f32 %v375, %v616
        %v618 = vpop.f32.mrf.mxu0
        %v619 = vadd.f32 %v379, %v618
        %620 = vmatprep.mubr.f32.mxu0 0.0
        %621 = vmatmul.mubr.f32.gmra.mxu0 %v303
        %v622 = vpop.f32.mrf.mxu0
        %v623 = vadd.f32 %v375, %v622
        %v624 = vpop.f32.mrf.mxu0
        %v625 = vadd.f32 %v379, %v624
        %626 = vmatprep.mubr.f32.mxu0 0.0
        %627 = vmatmul.mubr.f32.gmra.mxu0 %v304
        %v628 = vpop.f32.mrf.mxu0
        %v629 = vadd.f32 %v375, %v628
        %v630 = vpop.f32.mrf.mxu0
        %v631 = vadd.f32 %v379, %v630
        %632 = vmatprep.mubr.f32.mxu0 0.0
        %633 = vmatmul.mubr.f32.gmra.mxu0 %v305
        %v634 = vpop.f32.mrf.mxu0
        %v635 = vadd.f32 %v375, %v634
        %v636 = vpop.f32.mrf.mxu0
        %v637 = vadd.f32 %v379, %v636
        %638 = vmatprep.mubr.f32.mxu0 0.0
        %639 = vmatmul.mubr.f32.gmra.mxu0 %v306
        %v640 = vpop.f32.mrf.mxu0
        %v641 = vadd.f32 %v375, %v640
        %v642 = vpop.f32.mrf.mxu0
        %v643 = vadd.f32 %v379, %v642
        %644 = vmatprep.mubr.f32.mxu0 0.0
        %645 = vmatmul.mubr.f32.gmra.mxu0 %v307
        %v646 = vpop.f32.mrf.mxu0
        %v647 = vadd.f32 %v375, %v646
        %v648 = vpop.f32.mrf.mxu0
        %v649 = vadd.f32 %v379, %v648
        %650 = vmatprep.mubr.f32.mxu0 0.0
        %651 = vmatmul.mubr.f32.gmra.mxu0 %v308
        %v652 = vpop.f32.mrf.mxu0
        %v653 = vadd.f32 %v375, %v652
        %v654 = vpop.f32.mrf.mxu0
        %v655 = vadd.f32 %v379, %v654
        %656 = vmatprep.mubr.f32.mxu0 0.0
        %657 = vmatmul.mubr.f32.gmra.mxu0 %v309
        %v658 = vpop.f32.mrf.mxu0
        %v659 = vadd.f32 %v375, %v658
        %v660 = vpop.f32.mrf.mxu0
        %v661 = vadd.f32 %v379, %v660
        %662 = vmatprep.mubr.f32.mxu0 0.0
        %663 = vmatmul.mubr.f32.gmra.mxu0 %v310
        %v664 = vpop.f32.mrf.mxu0
        %v665 = vadd.f32 %v375, %v664
        %v666 = vpop.f32.mrf.mxu0
        %v667 = vadd.f32 %v379, %v666
        %668 = vmatprep.mubr.f32.mxu0 0.0
        %669 = vmatmul.mubr.f32.gmra.mxu0 %v311
        %v670 = vpop.f32.mrf.mxu0
        %v671 = vadd.f32 %v375, %v670
        %v672 = vpop.f32.mrf.mxu0
        %v673 = vadd.f32 %v379, %v672
        %674 = vmatprep.mubr.f32.mxu0 0.0
        %675 = vmatmul.mubr.f32.gmra.mxu0 %v312
        %v676 = vpop.f32.mrf.mxu0
        %v677 = vadd.f32 %v375, %v676
        %v678 = vpop.f32.mrf.mxu0
        %v679 = vadd.f32 %v379, %v678
        %680 = vmatprep.mubr.f32.mxu0 0.0
        %681 = vmatmul.mubr.f32.gmra.mxu0 %v313
        %v682 = vpop.f32.mrf.mxu0
        %v683 = vadd.f32 %v375, %v682
        %v684 = vpop.f32.mrf.mxu0
        %v685 = vadd.f32 %v379, %v684
        %686 = vmatprep.mubr.f32.mxu0 0.0
        %687 = vmatmul.mubr.f32.gmra.mxu0 %v314
        %v688 = vpop.f32.mrf.mxu0
        %v689 = vadd.f32 %v375, %v688
        %v690 = vpop.f32.mrf.mxu0
        %v691 = vadd.f32 %v379, %v690
        %692 = vmatprep.mubr.f32.mxu0 0.0
        %693 = vmatmul.mubr.f32.gmra.mxu0 %v315
        %v694 = vpop.f32.mrf.mxu0
        %v695 = vadd.f32 %v375, %v694
        %v696 = vpop.f32.mrf.mxu0
        %v697 = vadd.f32 %v379, %v696
        %698 = vmatprep.mubr.f32.mxu0 0.0
        %699 = vmatmul.mubr.f32.gmra.mxu0 %v316
        %v700 = vpop.f32.mrf.mxu0
        %v701 = vadd.f32 %v375, %v700
        %v702 = vpop.f32.mrf.mxu0
        %v703 = vadd.f32 %v379, %v702
        %704 = vmatprep.mubr.f32.mxu0 0.0
        %705 = vmatmul.mubr.f32.gmra.mxu0 %v317
        %v706 = vpop.f32.mrf.mxu0
        %v707 = vadd.f32 %v375, %v706
        %v708 = vpop.f32.mrf.mxu0
        %v709 = vadd.f32 %v379, %v708
        %710 = vmatprep.mubr.f32.mxu0 0.0
        %711 = vmatmul.mubr.f32.gmra.mxu0 %v318
        %v712 = vpop.f32.mrf.mxu0
        %v713 = vadd.f32 %v375, %v712
        %v714 = vpop.f32.mrf.mxu0
        %v715 = vadd.f32 %v379, %v714
        %716 = vmatprep.mubr.f32.mxu0 0.0
        %717 = vmatmul.mubr.f32.gmra.mxu0 %v319
        %v718 = vpop.f32.mrf.mxu0
        %v719 = vadd.f32 %v375, %v718
        %v720 = vpop.f32.mrf.mxu0
        %v721 = vadd.f32 %v379, %v720
        %722 = vmatprep.mubr.f32.mxu0 0.0
        %723 = vmatmul.mubr.f32.gmra.mxu0 %v320
        %v724 = vpop.f32.mrf.mxu0
        %v725 = vadd.f32 %v375, %v724
        %v726 = vpop.f32.mrf.mxu0
        %v727 = vadd.f32 %v379, %v726
        %728 = vmatprep.mubr.f32.mxu0 0.0
        %729 = vmatmul.mubr.f32.gmra.mxu0 %v321
        %v730 = vpop.f32.mrf.mxu0
        %v731 = vadd.f32 %v375, %v730
        %v732 = vpop.f32.mrf.mxu0
        %v733 = vadd.f32 %v379, %v732
        %734 = vmatprep.mubr.f32.mxu0 0.0
        %735 = vmatmul.mubr.f32.gmra.mxu0 %v322
        %v736 = vpop.f32.mrf.mxu0
        %v737 = vadd.f32 %v375, %v736
        %v738 = vpop.f32.mrf.mxu0
        %v739 = vadd.f32 %v379, %v738
        %740 = vmatprep.mubr.f32.mxu0 0.0
        %741 = vmatmul.mubr.f32.gmra.mxu0 %v323
        %v742 = vpop.f32.mrf.mxu0
        %v743 = vadd.f32 %v375, %v742
        %v744 = vpop.f32.mrf.mxu0
        %v745 = vadd.f32 %v379, %v744
        %746 = vmatprep.mubr.f32.mxu0 0.0
        %747 = vmatmul.mubr.f32.gmra.mxu0 %v324
        %v748 = vpop.f32.mrf.mxu0
        %v749 = vadd.f32 %v375, %v748
        %v750 = vpop.f32.mrf.mxu0
        %v751 = vadd.f32 %v379, %v750
        %752 = vmatprep.mubr.f32.mxu0 0.0
        %753 = vmatmul.mubr.f32.gmra.mxu0 %v325
        %v754 = vpop.f32.mrf.mxu0
        %v755 = vadd.f32 %v375, %v754
        %v756 = vpop.f32.mrf.mxu0
        %v757 = vadd.f32 %v379, %v756
        %758 = vmatprep.mubr.f32.mxu0 0.0
        %759 = vmatmul.mubr.f32.gmra.mxu0 %v326
        %v760 = vpop.f32.mrf.mxu0
        %v761 = vadd.f32 %v375, %v760
        %v762 = vpop.f32.mrf.mxu0
        %v763 = vadd.f32 %v379, %v762
        %764 = vmatprep.mubr.f32.mxu0 0.0
        %765 = vmatmul.mubr.f32.gmra.mxu0 %v327
        %v766 = vpop.f32.mrf.mxu0
        %v767 = vadd.f32 %v375, %v766
        %v768 = vpop.f32.mrf.mxu0
        %v769 = vadd.f32 %v379, %v768
        %770 = vmatprep.mubr.f32.mxu0 0.0
        %771 = vmatmul.mubr.f32.gmra.mxu0 %v328
        %v772 = vpop.f32.mrf.mxu0
        %v773 = vadd.f32 %v375, %v772
        %v774 = vpop.f32.mrf.mxu0
        %v775 = vadd.f32 %v379, %v774
        %776 = vmatprep.mubr.f32.mxu0 0.0
        %777 = vmatmul.mubr.f32.gmra.mxu0 %v329
        %v778 = vpop.f32.mrf.mxu0
        %v779 = vadd.f32 %v375, %v778
        %v780 = vpop.f32.mrf.mxu0
        %v781 = vadd.f32 %v379, %v780
        %782 = vmatprep.mubr.f32.mxu0 0.0
        %783 = vmatmul.mubr.f32.gmra.mxu0 %v330
        %v784 = vpop.f32.mrf.mxu0
        %v785 = vadd.f32 %v375, %v784
        %v786 = vpop.f32.mrf.mxu0
        %v787 = vadd.f32 %v379, %v786
        %788 = vmatprep.mubr.f32.mxu0 0.0
        %789 = vmatmul.mubr.f32.gmra.mxu0 %v331
        %v790 = vpop.f32.mrf.mxu0
        %v791 = vadd.f32 %v375, %v790
        %v792 = vpop.f32.mrf.mxu0
        %v793 = vadd.f32 %v379, %v792
        %794 = vmatprep.mubr.f32.mxu0 0.0
        %795 = vmatmul.mubr.f32.gmra.mxu0 %v332
        %v796 = vpop.f32.mrf.mxu0
        %v797 = vadd.f32 %v375, %v796
        %v798 = vpop.f32.mrf.mxu0
        %v799 = vadd.f32 %v379, %v798
        %800 = vmatprep.mubr.f32.mxu0 0.0
        %801 = vmatmul.mubr.f32.gmra.mxu0 %v333
        %v802 = vpop.f32.mrf.mxu0
        %v803 = vadd.f32 %v375, %v802
        %v804 = vpop.f32.mrf.mxu0
        %v805 = vadd.f32 %v379, %v804
        %806 = vmatprep.mubr.f32.mxu0 0.0
        %807 = vmatmul.mubr.f32.gmra.mxu0 %v334
        %v808 = vpop.f32.mrf.mxu0
        %v809 = vadd.f32 %v375, %v808
        %v810 = vpop.f32.mrf.mxu0
        %v811 = vadd.f32 %v379, %v810
        %812 = vmatprep.mubr.f32.mxu0 0.0
        %813 = vmatmul.mubr.f32.gmra.mxu0 %v335
        %v814 = vpop.f32.mrf.mxu0
        %v815 = vadd.f32 %v375, %v814
        %v816 = vpop.f32.mrf.mxu0
        %v817 = vadd.f32 %v379, %v816
        %818 = vmatprep.mubr.f32.mxu0 0.0
        %819 = vmatmul.mubr.f32.gmra.mxu0 %v336
        %v820 = vpop.f32.mrf.mxu0
        %v821 = vadd.f32 %v375, %v820
        %v822 = vpop.f32.mrf.mxu0
        %v823 = vadd.f32 %v379, %v822
        %824 = vmatprep.mubr.f32.mxu0 0.0
        %825 = vmatmul.mubr.f32.gmra.mxu0 %v337
        %v826 = vpop.f32.mrf.mxu0
        %v827 = vadd.f32 %v375, %v826
        %v828 = vpop.f32.mrf.mxu0
        %v829 = vadd.f32 %v379, %v828
        %830 = vdwg.mxu0
        %v831 = vmax.f32 %v449, 0.0
        %v832 = vmax.f32 %v451, 0.0
        %v833 = vmax.f32 %v455, 0.0
        %v834 = vmax.f32 %v457, 0.0
        %v835 = vmax.f32 %v461, 0.0
        %v836 = vmax.f32 %v463, 0.0
        %v837 = vmax.f32 %v467, 0.0
        %v838 = vmax.f32 %v469, 0.0
        %v839 = vmax.f32 %v473, 0.0
        %v840 = vmax.f32 %v475, 0.0
        %v841 = vmax.f32 %v479, 0.0
        %v842 = vmax.f32 %v481, 0.0
        %v843 = vmax.f32 %v485, 0.0
        %v844 = vmax.f32 %v487, 0.0
        %v845 = vmax.f32 %v491, 0.0
        %v846 = vmax.f32 %v493, 0.0
        %v847 = vmax.f32 %v497, 0.0
        %v848 = vmax.f32 %v499, 0.0
        %v849 = vmax.f32 %v503, 0.0
        %v850 = vmax.f32 %v505, 0.0
        %v851 = vmax.f32 %v509, 0.0
        %v852 = vmax.f32 %v511, 0.0
        %v853 = vmax.f32 %v515, 0.0
        %v854 = vmax.f32 %v517, 0.0
        %v855 = vmax.f32 %v521, 0.0
        %v856 = vmax.f32 %v523, 0.0
        %v857 = vmax.f32 %v527, 0.0
        %v858 = vmax.f32 %v529, 0.0
        %v859 = vmax.f32 %v533, 0.0
        %v860 = vmax.f32 %v535, 0.0
        %v861 = vmax.f32 %v539, 0.0
        %v862 = vmax.f32 %v541, 0.0
        %v863 = vmax.f32 %v545, 0.0
        %v864 = vmax.f32 %v547, 0.0
        %v865 = vmax.f32 %v551, 0.0
        %v866 = vmax.f32 %v553, 0.0
        %v867 = vmax.f32 %v557, 0.0
        %v868 = vmax.f32 %v559, 0.0
        %v869 = vmax.f32 %v563, 0.0
        %v870 = vmax.f32 %v565, 0.0
        %v871 = vmax.f32 %v569, 0.0
        %v872 = vmax.f32 %v571, 0.0
        %v873 = vmax.f32 %v575, 0.0
        %v874 = vmax.f32 %v577, 0.0
        %v875 = vmax.f32 %v581, 0.0
        %v876 = vmax.f32 %v583, 0.0
        %v877 = vmax.f32 %v587, 0.0
        %v878 = vmax.f32 %v589, 0.0
        %v879 = vmax.f32 %v593, 0.0
        %v880 = vmax.f32 %v595, 0.0
        %v881 = vmax.f32 %v599, 0.0
        %v882 = vmax.f32 %v601, 0.0
        %v883 = vmax.f32 %v605, 0.0
        %v884 = vmax.f32 %v607, 0.0
        %v885 = vmax.f32 %v611, 0.0
        %v886 = vmax.f32 %v613, 0.0
        %v887 = vmax.f32 %v617, 0.0
        %v888 = vmax.f32 %v619, 0.0
        %v889 = vmax.f32 %v623, 0.0
        %v890 = vmax.f32 %v625, 0.0
        %v891 = vmax.f32 %v629, 0.0
        %v892 = vmax.f32 %v631, 0.0
        %v893 = vmax.f32 %v635, 0.0
        %v894 = vmax.f32 %v637, 0.0
        %v895 = vmax.f32 %v641, 0.0
        %v896 = vmax.f32 %v643, 0.0
        %v897 = vmax.f32 %v647, 0.0
        %v898 = vmax.f32 %v649, 0.0
        %v899 = vmax.f32 %v653, 0.0
        %v900 = vmax.f32 %v655, 0.0
        %v901 = vmax.f32 %v659, 0.0
        %v902 = vmax.f32 %v661, 0.0
        %v903 = vmax.f32 %v665, 0.0
        %v904 = vmax.f32 %v667, 0.0
        %v905 = vmax.f32 %v671, 0.0
        %v906 = vmax.f32 %v673, 0.0
        %v907 = vmax.f32 %v677, 0.0
        %v908 = vmax.f32 %v679, 0.0
        %v909 = vmax.f32 %v683, 0.0
        %v910 = vmax.f32 %v685, 0.0
        %v911 = vmax.f32 %v689, 0.0
        %v912 = vmax.f32 %v691, 0.0
        %v913 = vmax.f32 %v695, 0.0
        %v914 = vmax.f32 %v697, 0.0
        %v915 = vmax.f32 %v701, 0.0
        %v916 = vmax.f32 %v703, 0.0
        %v917 = vmax.f32 %v707, 0.0
        %v918 = vmax.f32 %v709, 0.0
        %v919 = vmax.f32 %v713, 0.0
        %v920 = vmax.f32 %v715, 0.0
        %v921 = vmax.f32 %v719, 0.0
        %v922 = vmax.f32 %v721, 0.0
        %v923 = vmax.f32 %v725, 0.0
        %v924 = vmax.f32 %v727, 0.0
        %v925 = vmax.f32 %v731, 0.0
        %v926 = vmax.f32 %v733, 0.0
        %v927 = vmax.f32 %v737, 0.0
        %v928 = vmax.f32 %v739, 0.0
        %v929 = vmax.f32 %v743, 0.0
        %v930 = vmax.f32 %v745, 0.0
        %v931 = vmax.f32 %v749, 0.0
        %v932 = vmax.f32 %v751, 0.0
        %v933 = vmax.f32 %v755, 0.0
        %v934 = vmax.f32 %v757, 0.0
        %v935 = vmax.f32 %v761, 0.0
        %v936 = vmax.f32 %v763, 0.0
        %v937 = vmax.f32 %v767, 0.0
        %v938 = vmax.f32 %v769, 0.0
        %v939 = vmax.f32 %v773, 0.0
        %v940 = vmax.f32 %v775, 0.0
        %v941 = vmax.f32 %v779, 0.0
        %v942 = vmax.f32 %v781, 0.0
        %v943 = vmax.f32 %v785, 0.0
        %v944 = vmax.f32 %v787, 0.0
        %v945 = vmax.f32 %v791, 0.0
        %v946 = vmax.f32 %v793, 0.0
        %v947 = vmax.f32 %v797, 0.0
        %v948 = vmax.f32 %v799, 0.0
        %v949 = vmax.f32 %v803, 0.0
        %v950 = vmax.f32 %v805, 0.0
        %v951 = vmax.f32 %v809, 0.0
        %v952 = vmax.f32 %v811, 0.0
        %v953 = vmax.f32 %v815, 0.0
        %v954 = vmax.f32 %v817, 0.0
        %v955 = vmax.f32 %v821, 0.0
        %v956 = vmax.f32 %v823, 0.0
        %v957 = vmax.f32 %v827, 0.0
        %v958 = vmax.f32 %v829, 0.0
        %v959 = vld [vmem:[#allocation7] sm:$0xff]
        %v960 = vld [vmem:[#allocation7 + $0x8] sm:$0xff]
        %v961 = vld [vmem:[#allocation7 + $0x10] sm:$0xff]
        %v962 = vld [vmem:[#allocation7 + $0x18] sm:$0xff]
        %v963 = vld [vmem:[#allocation7 + $0x20] sm:$0xff]
        %v964 = vld [vmem:[#allocation7 + $0x28] sm:$0xff]
        %v965 = vld [vmem:[#allocation7 + $0x30] sm:$0xff]
        %v966 = vld [vmem:[#allocation7 + $0x38] sm:$0xff]
        %v967 = vld [vmem:[#allocation7 + $0x40] sm:$0xff]
        %v968 = vld [vmem:[#allocation7 + $0x48] sm:$0xff]
        %v969 = vld [vmem:[#allocation7 + $0x50] sm:$0xff]
        %v970 = vld [vmem:[#allocation7 + $0x58] sm:$0xff]
        %v971 = vld [vmem:[#allocation7 + $0x60] sm:$0xff]
        %v972 = vld [vmem:[#allocation7 + $0x68] sm:$0xff]
        %v973 = vld [vmem:[#allocation7 + $0x70] sm:$0xff]
        %v974 = vld [vmem:[#allocation7 + $0x78] sm:$0xff]
        %v975 = vld [vmem:[#allocation7 + $0x80] sm:$0xff]
        %v976 = vld [vmem:[#allocation7 + $0x88] sm:$0xff]
        %v977 = vld [vmem:[#allocation7 + $0x90] sm:$0xff]
        %v978 = vld [vmem:[#allocation7 + $0x98] sm:$0xff]
        %v979 = vld [vmem:[#allocation7 + $0xa0] sm:$0xff]
        %v980 = vld [vmem:[#allocation7 + $0xa8] sm:$0xff]
        %v981 = vld [vmem:[#allocation7 + $0xb0] sm:$0xff]
        %v982 = vld [vmem:[#allocation7 + $0xb8] sm:$0xff]
        %v983 = vld [vmem:[#allocation7 + $0xc0] sm:$0xff]
        %v984 = vld [vmem:[#allocation7 + $0xc8] sm:$0xff]
        %v985 = vld [vmem:[#allocation7 + $0xd0] sm:$0xff]
        %v986 = vld [vmem:[#allocation7 + $0xd8] sm:$0xff]
        %v987 = vld [vmem:[#allocation7 + $0xe0] sm:$0xff]
        %v988 = vld [vmem:[#allocation7 + $0xe8] sm:$0xff]
        %v989 = vld [vmem:[#allocation7 + $0xf0] sm:$0xff]
        %v990 = vld [vmem:[#allocation7 + $0xf8] sm:$0xff]
        %v991 = vld [vmem:[%s4] sm:$0x1]
        %v993 = vlaneseq
        %v994 = vshrl.u32 %v993, 7
        %v995 = vsub.s32 0, %v994
        %v996 = vrot.slane %v991, %v995
        %998 = vmatprep.subr.mxu0 0.0
        %999 = vmatpush1.msra.mxu0 %v974
        %1000 = vmatprep.subr.mxu0 0.0
        %1001 = vmatpush1.msra.mxu0 %v973
        %1002 = vmatprep.subr.mxu0 0.0
        %1003 = vmatpush1.msra.mxu0 %v972
        %1004 = vmatprep.subr.mxu0 0.0
        %1005 = vmatpush1.msra.mxu0 %v971
        %1006 = vmatprep.subr.mxu0 0.0
        %1007 = vmatpush1.msra.mxu0 %v970
        %1008 = vmatprep.subr.mxu0 0.0
        %1009 = vmatpush1.msra.mxu0 %v969
        %1010 = vmatprep.subr.mxu0 0.0
        %1011 = vmatpush1.msra.mxu0 %v968
        %1012 = vmatprep.subr.mxu0 0.0
        %1013 = vmatpush1.msra.mxu0 %v967
        %1014 = vmatprep.subr.mxu0 0.0
        %1015 = vmatpush1.msra.mxu0 %v966
        %1016 = vmatprep.subr.mxu0 0.0
        %1017 = vmatpush1.msra.mxu0 %v965
        %1018 = vmatprep.subr.mxu0 0.0
        %1019 = vmatpush1.msra.mxu0 %v964
        %1020 = vmatprep.subr.mxu0 0.0
        %1021 = vmatpush1.msra.mxu0 %v963
        %1022 = vmatprep.subr.mxu0 0.0
        %1023 = vmatpush1.msra.mxu0 %v962
        %1024 = vmatprep.subr.mxu0 0.0
        %1025 = vmatpush1.msra.mxu0 %v961
        %1026 = vmatprep.subr.mxu0 0.0
        %1027 = vmatpush1.msra.mxu0 %v960
        %1028 = vmatprep.subr.mxu0 0.0
        %1029 = vmatpush1.msra.mxu0 %v959
        %1030 = vmatprep.subr.mxu0 0.0
        %1031 = vmatpush2.msra.mxu0 %v990
        %1032 = vmatprep.subr.mxu0 0.0
        %1033 = vmatpush2.msra.mxu0 %v989
        %1034 = vmatprep.subr.mxu0 0.0
        %1035 = vmatpush2.msra.mxu0 %v988
        %1036 = vmatprep.subr.mxu0 0.0
        %1037 = vmatpush2.msra.mxu0 %v987
        %1038 = vmatprep.subr.mxu0 0.0
        %1039 = vmatpush2.msra.mxu0 %v986
        %1040 = vmatprep.subr.mxu0 0.0
        %1041 = vmatpush2.msra.mxu0 %v985
        %1042 = vmatprep.subr.mxu0 0.0
        %1043 = vmatpush2.msra.mxu0 %v984
        %1044 = vmatprep.subr.mxu0 0.0
        %1045 = vmatpush2.msra.mxu0 %v983
        %1046 = vmatprep.subr.mxu0 0.0
        %1047 = vmatpush2.msra.mxu0 %v982
        %1048 = vmatprep.subr.mxu0 0.0
        %1049 = vmatpush2.msra.mxu0 %v981
        %1050 = vmatprep.subr.mxu0 0.0
        %1051 = vmatpush2.msra.mxu0 %v980
        %1052 = vmatprep.subr.mxu0 0.0
        %1053 = vmatpush2.msra.mxu0 %v979
        %1054 = vmatprep.subr.mxu0 0.0
        %1055 = vmatpush2.msra.mxu0 %v978
        %1056 = vmatprep.subr.mxu0 0.0
        %1057 = vmatpush2.msra.mxu0 %v977
        %1058 = vmatprep.subr.mxu0 0.0
        %1059 = vmatpush2.msra.mxu0 %v976
        %1060 = vmatprep.subr.mxu0 0.0
        %1061 = vmatpush2.msra.mxu0 %v975
        %1062 = vmatprep.mubr.f32.mxu0 %v832
        %1063 = vmatmul.mubr.f32.gmra.mxu0 %v831
        %v1064 = vpop.f32.mrf.mxu0
        %v1065 = vadd.f32 %v996, %v1064
        %v1066 = vpop.f32.mrf.mxu0
        %1067 = vmatprep.mubr.f32.mxu0 %v834
        %1068 = vmatmul.mubr.f32.gmra.mxu0 %v833
        %v1069 = vpop.f32.mrf.mxu0
        %v1070 = vadd.f32 %v996, %v1069
        %v1071 = vpop.f32.mrf.mxu0
        %1072 = vmatprep.mubr.f32.mxu0 %v836
        %1073 = vmatmul.mubr.f32.gmra.mxu0 %v835
        %v1074 = vpop.f32.mrf.mxu0
        %v1075 = vadd.f32 %v996, %v1074
        %v1076 = vpop.f32.mrf.mxu0
        %1077 = vmatprep.mubr.f32.mxu0 %v838
        %1078 = vmatmul.mubr.f32.gmra.mxu0 %v837
        %v1079 = vpop.f32.mrf.mxu0
        %v1080 = vadd.f32 %v996, %v1079
        %v1081 = vpop.f32.mrf.mxu0
        %1082 = vmatprep.mubr.f32.mxu0 %v840
        %1083 = vmatmul.mubr.f32.gmra.mxu0 %v839
        %v1084 = vpop.f32.mrf.mxu0
        %v1085 = vadd.f32 %v996, %v1084
        %v1086 = vpop.f32.mrf.mxu0
        %1087 = vmatprep.mubr.f32.mxu0 %v842
        %1088 = vmatmul.mubr.f32.gmra.mxu0 %v841
        %v1089 = vpop.f32.mrf.mxu0
        %v1090 = vadd.f32 %v996, %v1089
        %v1091 = vpop.f32.mrf.mxu0
        %1092 = vmatprep.mubr.f32.mxu0 %v844
        %1093 = vmatmul.mubr.f32.gmra.mxu0 %v843
        %v1094 = vpop.f32.mrf.mxu0
        %v1095 = vadd.f32 %v996, %v1094
        %v1096 = vpop.f32.mrf.mxu0
        %1097 = vmatprep.mubr.f32.mxu0 %v846
        %1098 = vmatmul.mubr.f32.gmra.mxu0 %v845
        %v1099 = vpop.f32.mrf.mxu0
        %v1100 = vadd.f32 %v996, %v1099
        %v1101 = vpop.f32.mrf.mxu0
        %1102 = vmatprep.mubr.f32.mxu0 %v848
        %1103 = vmatmul.mubr.f32.gmra.mxu0 %v847
        %v1104 = vpop.f32.mrf.mxu0
        %v1105 = vadd.f32 %v996, %v1104
        %v1106 = vpop.f32.mrf.mxu0
        %1107 = vmatprep.mubr.f32.mxu0 %v850
        %1108 = vmatmul.mubr.f32.gmra.mxu0 %v849
        %v1109 = vpop.f32.mrf.mxu0
        %v1110 = vadd.f32 %v996, %v1109
        %v1111 = vpop.f32.mrf.mxu0
        %1112 = vmatprep.mubr.f32.mxu0 %v852
        %1113 = vmatmul.mubr.f32.gmra.mxu0 %v851
        %v1114 = vpop.f32.mrf.mxu0
        %v1115 = vadd.f32 %v996, %v1114
        %v1116 = vpop.f32.mrf.mxu0
        %1117 = vmatprep.mubr.f32.mxu0 %v854
        %1118 = vmatmul.mubr.f32.gmra.mxu0 %v853
        %v1119 = vpop.f32.mrf.mxu0
        %v1120 = vadd.f32 %v996, %v1119
        %v1121 = vpop.f32.mrf.mxu0
        %1122 = vmatprep.mubr.f32.mxu0 %v856
        %1123 = vmatmul.mubr.f32.gmra.mxu0 %v855
        %v1124 = vpop.f32.mrf.mxu0
        %v1125 = vadd.f32 %v996, %v1124
        %v1126 = vpop.f32.mrf.mxu0
        %1127 = vmatprep.mubr.f32.mxu0 %v858
        %1128 = vmatmul.mubr.f32.gmra.mxu0 %v857
        %v1129 = vpop.f32.mrf.mxu0
        %v1130 = vadd.f32 %v996, %v1129
        %v1131 = vpop.f32.mrf.mxu0
        %1132 = vmatprep.mubr.f32.mxu0 %v860
        %1133 = vmatmul.mubr.f32.gmra.mxu0 %v859
        %v1134 = vpop.f32.mrf.mxu0
        %v1135 = vadd.f32 %v996, %v1134
        %v1136 = vpop.f32.mrf.mxu0
        %1137 = vmatprep.mubr.f32.mxu0 %v862
        %1138 = vmatmul.mubr.f32.gmra.mxu0 %v861
        %v1139 = vpop.f32.mrf.mxu0
        %v1140 = vadd.f32 %v996, %v1139
        %v1141 = vpop.f32.mrf.mxu0
        %1142 = vmatprep.mubr.f32.mxu0 %v864
        %1143 = vmatmul.mubr.f32.gmra.mxu0 %v863
        %v1144 = vpop.f32.mrf.mxu0
        %v1145 = vadd.f32 %v996, %v1144
        %v1146 = vpop.f32.mrf.mxu0
        %1147 = vmatprep.mubr.f32.mxu0 %v866
        %1148 = vmatmul.mubr.f32.gmra.mxu0 %v865
        %v1149 = vpop.f32.mrf.mxu0
        %v1150 = vadd.f32 %v996, %v1149
        %v1151 = vpop.f32.mrf.mxu0
        %1152 = vmatprep.mubr.f32.mxu0 %v868
        %1153 = vmatmul.mubr.f32.gmra.mxu0 %v867
        %v1154 = vpop.f32.mrf.mxu0
        %v1155 = vadd.f32 %v996, %v1154
        %v1156 = vpop.f32.mrf.mxu0
        %1157 = vmatprep.mubr.f32.mxu0 %v870
        %1158 = vmatmul.mubr.f32.gmra.mxu0 %v869
        %v1159 = vpop.f32.mrf.mxu0
        %v1160 = vadd.f32 %v996, %v1159
        %v1161 = vpop.f32.mrf.mxu0
        %1162 = vmatprep.mubr.f32.mxu0 %v872
        %1163 = vmatmul.mubr.f32.gmra.mxu0 %v871
        %v1164 = vpop.f32.mrf.mxu0
        %v1165 = vadd.f32 %v996, %v1164
        %v1166 = vpop.f32.mrf.mxu0
        %1167 = vmatprep.mubr.f32.mxu0 %v874
        %1168 = vmatmul.mubr.f32.gmra.mxu0 %v873
        %v1169 = vpop.f32.mrf.mxu0
        %v1170 = vadd.f32 %v996, %v1169
        %v1171 = vpop.f32.mrf.mxu0
        %1172 = vmatprep.mubr.f32.mxu0 %v876
        %1173 = vmatmul.mubr.f32.gmra.mxu0 %v875
        %v1174 = vpop.f32.mrf.mxu0
        %v1175 = vadd.f32 %v996, %v1174
        %v1176 = vpop.f32.mrf.mxu0
        %1177 = vmatprep.mubr.f32.mxu0 %v878
        %1178 = vmatmul.mubr.f32.gmra.mxu0 %v877
        %v1179 = vpop.f32.mrf.mxu0
        %v1180 = vadd.f32 %v996, %v1179
        %v1181 = vpop.f32.mrf.mxu0
        %1182 = vmatprep.mubr.f32.mxu0 %v880
        %1183 = vmatmul.mubr.f32.gmra.mxu0 %v879
        %v1184 = vpop.f32.mrf.mxu0
        %v1185 = vadd.f32 %v996, %v1184
        %v1186 = vpop.f32.mrf.mxu0
        %1187 = vmatprep.mubr.f32.mxu0 %v882
        %1188 = vmatmul.mubr.f32.gmra.mxu0 %v881
        %v1189 = vpop.f32.mrf.mxu0
        %v1190 = vadd.f32 %v996, %v1189
        %v1191 = vpop.f32.mrf.mxu0
        %1192 = vmatprep.mubr.f32.mxu0 %v884
        %1193 = vmatmul.mubr.f32.gmra.mxu0 %v883
        %v1194 = vpop.f32.mrf.mxu0
        %v1195 = vadd.f32 %v996, %v1194
        %v1196 = vpop.f32.mrf.mxu0
        %1197 = vmatprep.mubr.f32.mxu0 %v886
        %1198 = vmatmul.mubr.f32.gmra.mxu0 %v885
        %v1199 = vpop.f32.mrf.mxu0
        %v1200 = vadd.f32 %v996, %v1199
        %v1201 = vpop.f32.mrf.mxu0
        %1202 = vmatprep.mubr.f32.mxu0 %v888
        %1203 = vmatmul.mubr.f32.gmra.mxu0 %v887
        %v1204 = vpop.f32.mrf.mxu0
        %v1205 = vadd.f32 %v996, %v1204
        %v1206 = vpop.f32.mrf.mxu0
        %1207 = vmatprep.mubr.f32.mxu0 %v890
        %1208 = vmatmul.mubr.f32.gmra.mxu0 %v889
        %v1209 = vpop.f32.mrf.mxu0
        %v1210 = vadd.f32 %v996, %v1209
        %v1211 = vpop.f32.mrf.mxu0
        %1212 = vmatprep.mubr.f32.mxu0 %v892
        %1213 = vmatmul.mubr.f32.gmra.mxu0 %v891
        %v1214 = vpop.f32.mrf.mxu0
        %v1215 = vadd.f32 %v996, %v1214
        %v1216 = vpop.f32.mrf.mxu0
        %1217 = vmatprep.mubr.f32.mxu0 %v894
        %1218 = vmatmul.mubr.f32.gmra.mxu0 %v893
        %v1219 = vpop.f32.mrf.mxu0
        %v1220 = vadd.f32 %v996, %v1219
        %v1221 = vpop.f32.mrf.mxu0
        %1222 = vmatprep.mubr.f32.mxu0 %v896
        %1223 = vmatmul.mubr.f32.gmra.mxu0 %v895
        %v1224 = vpop.f32.mrf.mxu0
        %v1225 = vadd.f32 %v996, %v1224
        %v1226 = vpop.f32.mrf.mxu0
        %1227 = vmatprep.mubr.f32.mxu0 %v898
        %1228 = vmatmul.mubr.f32.gmra.mxu0 %v897
        %v1229 = vpop.f32.mrf.mxu0
        %v1230 = vadd.f32 %v996, %v1229
        %v1231 = vpop.f32.mrf.mxu0
        %1232 = vmatprep.mubr.f32.mxu0 %v900
        %1233 = vmatmul.mubr.f32.gmra.mxu0 %v899
        %v1234 = vpop.f32.mrf.mxu0
        %v1235 = vadd.f32 %v996, %v1234
        %v1236 = vpop.f32.mrf.mxu0
        %1237 = vmatprep.mubr.f32.mxu0 %v902
        %1238 = vmatmul.mubr.f32.gmra.mxu0 %v901
        %v1239 = vpop.f32.mrf.mxu0
        %v1240 = vadd.f32 %v996, %v1239
        %v1241 = vpop.f32.mrf.mxu0
        %1242 = vmatprep.mubr.f32.mxu0 %v904
        %1243 = vmatmul.mubr.f32.gmra.mxu0 %v903
        %v1244 = vpop.f32.mrf.mxu0
        %v1245 = vadd.f32 %v996, %v1244
        %v1246 = vpop.f32.mrf.mxu0
        %1247 = vmatprep.mubr.f32.mxu0 %v906
        %1248 = vmatmul.mubr.f32.gmra.mxu0 %v905
        %v1249 = vpop.f32.mrf.mxu0
        %v1250 = vadd.f32 %v996, %v1249
        %v1251 = vpop.f32.mrf.mxu0
        %1252 = vmatprep.mubr.f32.mxu0 %v908
        %1253 = vmatmul.mubr.f32.gmra.mxu0 %v907
        %v1254 = vpop.f32.mrf.mxu0
        %v1255 = vadd.f32 %v996, %v1254
        %v1256 = vpop.f32.mrf.mxu0
        %1257 = vmatprep.mubr.f32.mxu0 %v910
        %1258 = vmatmul.mubr.f32.gmra.mxu0 %v909
        %v1259 = vpop.f32.mrf.mxu0
        %v1260 = vadd.f32 %v996, %v1259
        %v1261 = vpop.f32.mrf.mxu0
        %1262 = vmatprep.mubr.f32.mxu0 %v912
        %1263 = vmatmul.mubr.f32.gmra.mxu0 %v911
        %v1264 = vpop.f32.mrf.mxu0
        %v1265 = vadd.f32 %v996, %v1264
        %v1266 = vpop.f32.mrf.mxu0
        %1267 = vmatprep.mubr.f32.mxu0 %v914
        %1268 = vmatmul.mubr.f32.gmra.mxu0 %v913
        %v1269 = vpop.f32.mrf.mxu0
        %v1270 = vadd.f32 %v996, %v1269
        %v1271 = vpop.f32.mrf.mxu0
        %1272 = vmatprep.mubr.f32.mxu0 %v916
        %1273 = vmatmul.mubr.f32.gmra.mxu0 %v915
        %v1274 = vpop.f32.mrf.mxu0
        %v1275 = vadd.f32 %v996, %v1274
        %v1276 = vpop.f32.mrf.mxu0
        %1277 = vmatprep.mubr.f32.mxu0 %v918
        %1278 = vmatmul.mubr.f32.gmra.mxu0 %v917
        %v1279 = vpop.f32.mrf.mxu0
        %v1280 = vadd.f32 %v996, %v1279
        %v1281 = vpop.f32.mrf.mxu0
        %1282 = vmatprep.mubr.f32.mxu0 %v920
        %1283 = vmatmul.mubr.f32.gmra.mxu0 %v919
        %v1284 = vpop.f32.mrf.mxu0
        %v1285 = vadd.f32 %v996, %v1284
        %v1286 = vpop.f32.mrf.mxu0
        %1287 = vmatprep.mubr.f32.mxu0 %v922
        %1288 = vmatmul.mubr.f32.gmra.mxu0 %v921
        %v1289 = vpop.f32.mrf.mxu0
        %v1290 = vadd.f32 %v996, %v1289
        %v1291 = vpop.f32.mrf.mxu0
        %1292 = vmatprep.mubr.f32.mxu0 %v924
        %1293 = vmatmul.mubr.f32.gmra.mxu0 %v923
        %v1294 = vpop.f32.mrf.mxu0
        %v1295 = vadd.f32 %v996, %v1294
        %v1296 = vpop.f32.mrf.mxu0
        %1297 = vmatprep.mubr.f32.mxu0 %v926
        %1298 = vmatmul.mubr.f32.gmra.mxu0 %v925
        %v1299 = vpop.f32.mrf.mxu0
        %v1300 = vadd.f32 %v996, %v1299
        %v1301 = vpop.f32.mrf.mxu0
        %1302 = vmatprep.mubr.f32.mxu0 %v928
        %1303 = vmatmul.mubr.f32.gmra.mxu0 %v927
        %v1304 = vpop.f32.mrf.mxu0
        %v1305 = vadd.f32 %v996, %v1304
        %v1306 = vpop.f32.mrf.mxu0
        %1307 = vmatprep.mubr.f32.mxu0 %v930
        %1308 = vmatmul.mubr.f32.gmra.mxu0 %v929
        %v1309 = vpop.f32.mrf.mxu0
        %v1310 = vadd.f32 %v996, %v1309
        %v1311 = vpop.f32.mrf.mxu0
        %1312 = vmatprep.mubr.f32.mxu0 %v932
        %1313 = vmatmul.mubr.f32.gmra.mxu0 %v931
        %v1314 = vpop.f32.mrf.mxu0
        %v1315 = vadd.f32 %v996, %v1314
        %v1316 = vpop.f32.mrf.mxu0
        %1317 = vmatprep.mubr.f32.mxu0 %v934
        %1318 = vmatmul.mubr.f32.gmra.mxu0 %v933
        %v1319 = vpop.f32.mrf.mxu0
        %v1320 = vadd.f32 %v996, %v1319
        %v1321 = vpop.f32.mrf.mxu0
        %1322 = vmatprep.mubr.f32.mxu0 %v936
        %1323 = vmatmul.mubr.f32.gmra.mxu0 %v935
        %v1324 = vpop.f32.mrf.mxu0
        %v1325 = vadd.f32 %v996, %v1324
        %v1326 = vpop.f32.mrf.mxu0
        %1327 = vmatprep.mubr.f32.mxu0 %v938
        %1328 = vmatmul.mubr.f32.gmra.mxu0 %v937
        %v1329 = vpop.f32.mrf.mxu0
        %v1330 = vadd.f32 %v996, %v1329
        %v1331 = vpop.f32.mrf.mxu0
        %1332 = vmatprep.mubr.f32.mxu0 %v940
        %1333 = vmatmul.mubr.f32.gmra.mxu0 %v939
        %v1334 = vpop.f32.mrf.mxu0
        %v1335 = vadd.f32 %v996, %v1334
        %v1336 = vpop.f32.mrf.mxu0
        %1337 = vmatprep.mubr.f32.mxu0 %v942
        %1338 = vmatmul.mubr.f32.gmra.mxu0 %v941
        %v1339 = vpop.f32.mrf.mxu0
        %v1340 = vadd.f32 %v996, %v1339
        %v1341 = vpop.f32.mrf.mxu0
        %1342 = vmatprep.mubr.f32.mxu0 %v944
        %1343 = vmatmul.mubr.f32.gmra.mxu0 %v943
        %v1344 = vpop.f32.mrf.mxu0
        %v1345 = vadd.f32 %v996, %v1344
        %v1346 = vpop.f32.mrf.mxu0
        %1347 = vmatprep.mubr.f32.mxu0 %v946
        %1348 = vmatmul.mubr.f32.gmra.mxu0 %v945
        %v1349 = vpop.f32.mrf.mxu0
        %v1350 = vadd.f32 %v996, %v1349
        %v1351 = vpop.f32.mrf.mxu0
        %1352 = vmatprep.mubr.f32.mxu0 %v948
        %1353 = vmatmul.mubr.f32.gmra.mxu0 %v947
        %v1354 = vpop.f32.mrf.mxu0
        %v1355 = vadd.f32 %v996, %v1354
        %v1356 = vpop.f32.mrf.mxu0
        %1357 = vmatprep.mubr.f32.mxu0 %v950
        %1358 = vmatmul.mubr.f32.gmra.mxu0 %v949
        %v1359 = vpop.f32.mrf.mxu0
        %v1360 = vadd.f32 %v996, %v1359
        %v1361 = vpop.f32.mrf.mxu0
        %1362 = vmatprep.mubr.f32.mxu0 %v952
        %1363 = vmatmul.mubr.f32.gmra.mxu0 %v951
        %v1364 = vpop.f32.mrf.mxu0
        %v1365 = vadd.f32 %v996, %v1364
        %v1366 = vpop.f32.mrf.mxu0
        %1367 = vmatprep.mubr.f32.mxu0 %v954
        %1368 = vmatmul.mubr.f32.gmra.mxu0 %v953
        %v1369 = vpop.f32.mrf.mxu0
        %v1370 = vadd.f32 %v996, %v1369
        %v1371 = vpop.f32.mrf.mxu0
        %1372 = vmatprep.mubr.f32.mxu0 %v956
        %1373 = vmatmul.mubr.f32.gmra.mxu0 %v955
        %v1374 = vpop.f32.mrf.mxu0
        %v1375 = vadd.f32 %v996, %v1374
        %v1376 = vpop.f32.mrf.mxu0
        %1377 = vmatprep.mubr.f32.mxu0 %v958
        %1378 = vmatmul.mubr.f32.gmra.mxu0 %v957
        %v1379 = vpop.f32.mrf.mxu0
        %v1380 = vadd.f32 %v996, %v1379
        %v1381 = vpop.f32.mrf.mxu0
        %1382 = vdwg.mxu0
        %1383 = vst [vmem:[%s271] sm:$0xff] %v1065
        %1384 = vst [vmem:[%s271 + $0x8] sm:$0xff] %v1070
        %1385 = vst [vmem:[%s271 + $0x10] sm:$0xff] %v1075
        %1386 = vst [vmem:[%s271 + $0x18] sm:$0xff] %v1080
        %1387 = vst [vmem:[%s271 + $0x20] sm:$0xff] %v1085
        %1388 = vst [vmem:[%s271 + $0x28] sm:$0xff] %v1090
        %1389 = vst [vmem:[%s271 + $0x30] sm:$0xff] %v1095
        %1390 = vst [vmem:[%s271 + $0x38] sm:$0xff] %v1100
        %1391 = vst [vmem:[%s271 + $0x40] sm:$0xff] %v1105
        %1392 = vst [vmem:[%s271 + $0x48] sm:$0xff] %v1110
        %1393 = vst [vmem:[%s271 + $0x50] sm:$0xff] %v1115
        %1394 = vst [vmem:[%s271 + $0x58] sm:$0xff] %v1120
        %1395 = vst [vmem:[%s271 + $0x60] sm:$0xff] %v1125
        %1396 = vst [vmem:[%s271 + $0x68] sm:$0xff] %v1130
        %1397 = vst [vmem:[%s271 + $0x70] sm:$0xff] %v1135
        %1398 = vst [vmem:[%s271 + $0x78] sm:$0xff] %v1140
        %1399 = vst [vmem:[%s271 + $0x80] sm:$0xff] %v1145
        %1400 = vst [vmem:[%s271 + $0x88] sm:$0xff] %v1150
        %1401 = vst [vmem:[%s271 + $0x90] sm:$0xff] %v1155
        %1402 = vst [vmem:[%s271 + $0x98] sm:$0xff] %v1160
        %1403 = vst [vmem:[%s271 + $0xa0] sm:$0xff] %v1165
        %1404 = vst [vmem:[%s271 + $0xa8] sm:$0xff] %v1170
        %1405 = vst [vmem:[%s271 + $0xb0] sm:$0xff] %v1175
        %1406 = vst [vmem:[%s271 + $0xb8] sm:$0xff] %v1180
        %1407 = vst [vmem:[%s271 + $0xc0] sm:$0xff] %v1185
        %1408 = vst [vmem:[%s271 + $0xc8] sm:$0xff] %v1190
        %1409 = vst [vmem:[%s271 + $0xd0] sm:$0xff] %v1195
        %1410 = vst [vmem:[%s271 + $0xd8] sm:$0xff] %v1200
        %1411 = vst [vmem:[%s271 + $0xe0] sm:$0xff] %v1205
        %1412 = vst [vmem:[%s271 + $0xe8] sm:$0xff] %v1210
        %1413 = vst [vmem:[%s271 + $0xf0] sm:$0xff] %v1215
        %1414 = vst [vmem:[%s271 + $0xf8] sm:$0xff] %v1220
        %1415 = vst [vmem:[%s271 + $0x100] sm:$0xff] %v1225
        %1416 = vst [vmem:[%s271 + $0x108] sm:$0xff] %v1230
        %1417 = vst [vmem:[%s271 + $0x110] sm:$0xff] %v1235
        %1418 = vst [vmem:[%s271 + $0x118] sm:$0xff] %v1240
        %1419 = vst [vmem:[%s271 + $0x120] sm:$0xff] %v1245
        %1420 = vst [vmem:[%s271 + $0x128] sm:$0xff] %v1250
        %1421 = vst [vmem:[%s271 + $0x130] sm:$0xff] %v1255
        %1422 = vst [vmem:[%s271 + $0x138] sm:$0xff] %v1260
        %1423 = vst [vmem:[%s271 + $0x140] sm:$0xff] %v1265
        %1424 = vst [vmem:[%s271 + $0x148] sm:$0xff] %v1270
        %1425 = vst [vmem:[%s271 + $0x150] sm:$0xff] %v1275
        %1426 = vst [vmem:[%s271 + $0x158] sm:$0xff] %v1280
        %1427 = vst [vmem:[%s271 + $0x160] sm:$0xff] %v1285
        %1428 = vst [vmem:[%s271 + $0x168] sm:$0xff] %v1290
        %1429 = vst [vmem:[%s271 + $0x170] sm:$0xff] %v1295
        %1430 = vst [vmem:[%s271 + $0x178] sm:$0xff] %v1300
        %1431 = vst [vmem:[%s271 + $0x180] sm:$0xff] %v1305
        %1432 = vst [vmem:[%s271 + $0x188] sm:$0xff] %v1310
        %1433 = vst [vmem:[%s271 + $0x190] sm:$0xff] %v1315
        %1434 = vst [vmem:[%s271 + $0x198] sm:$0xff] %v1320
        %1435 = vst [vmem:[%s271 + $0x1a0] sm:$0xff] %v1325
        %1436 = vst [vmem:[%s271 + $0x1a8] sm:$0xff] %v1330
        %1437 = vst [vmem:[%s271 + $0x1b0] sm:$0xff] %v1335
        %1438 = vst [vmem:[%s271 + $0x1b8] sm:$0xff] %v1340
        %1439 = vst [vmem:[%s271 + $0x1c0] sm:$0xff] %v1345
        %1440 = vst [vmem:[%s271 + $0x1c8] sm:$0xff] %v1350
        %1441 = vst [vmem:[%s271 + $0x1d0] sm:$0xff] %v1355
        %1442 = vst [vmem:[%s271 + $0x1d8] sm:$0xff] %v1360
        %1443 = vst [vmem:[%s271 + $0x1e0] sm:$0xff] %v1365
        %1444 = vst [vmem:[%s271 + $0x1e8] sm:$0xff] %v1370
        %1445 = vst [vmem:[%s271 + $0x1f0] sm:$0xff] %v1375
        %1446 = vst [vmem:[%s271 + $0x1f8] sm:$0xff] %v1380
        %s1447 = sand.u32 %s141, 1
        %s1448 = scalar_lea.sflag [#allocation4], %s1447
        %s1449 = sand.u32 %s141, 1
        %s1450 = smul.addr %s1449, 512
        %s1451 = scalar_lea.vmem [#allocation8], %s1450
        // Predicated region
        $region53: #{tpu_custom_call.1} parent=39 // pred_check
          %p1452 = pneg %p151
        $region54: #{tpu_custom_call.1} parent=39 // pred_check_branch
          %1454 = sbr.rel (%p1452) target = $region56
        $region55: #{tpu_custom_call.1} parent=39 // pred_region
          %s1455 = smul.u32 64, %s23
          %s1457 = ssub.s32 8192, 8192
          %1458 = vsyncadd %s1448, %s1457
          %s1459 = smul.addr %s1455, 128
          %s1460 = scalar_lea.hbm %s5, %s1459
          %s1461 = sshll.u32 %s1451, 4
          %s1462 = int_to_ptr.vmem [resolvable:$true] %s1461
          %1467 = dma.vmem_to_hbm [thread:$0]  %s1462, 8192, %s1460, %s1448, 128, 128, 8
        $region56: #{tpu_custom_call.1} parent=39 // pred_fallthru
          _
      $region40: #{tpu_custom_call.1} parent=5 // pred_fallthru
        _
      %p1468 = scmp.le.s32.totalorder 2, %s18
      // Predicated region
      $region57: #{tpu_custom_call.1} parent=5 // pred_check
        %p1469 = pneg %p1468
      $region58: #{tpu_custom_call.1} parent=5 // pred_check_branch
        %1471 = sbr.rel (%p1469) target = $region60
      $region59: #{tpu_custom_call.1} parent=5 // pred_region
        %s1472 = ssub.s32 %s18, 2
        // Predicated region
        $region61: #{tpu_custom_call.1} parent=59 // pred_check
          %p1473 = pneg %p157
        $region62: #{tpu_custom_call.1} parent=59 // pred_check_branch
          %1475 = sbr.rel (%p1473) target = $region64
        $region63: #{tpu_custom_call.1} parent=59 // pred_region
          %s1476 = sand.u32 %s142, 1
          %s1477 = scalar_lea.sflag [#allocation4], %s1476
          %s1478 = sand.u32 %s142, 1
          %s1479 = smul.addr %s1478, 512
          %s1480 = scalar_lea.vmem [#allocation8], %s1479
          %1481 = dma.done %s1477, 8192
        $region64: #{tpu_custom_call.1} parent=59 // pred_fallthru
          _
      $region60: #{tpu_custom_call.1} parent=5 // pred_fallthru
        _
    $region6: #{tpu_custom_call.1} parent=1 // loop_footer
      %s22 = sadd.s32 1, %s18
    $region7: #{tpu_custom_call.1} parent=1 // loop_footer_branch
      %17 = sbr.rel target = $region3
    $region8: #{tpu_custom_call.1} parent=1 // loop_exit
      _
    %1482 = vsyncpa [#allocation3], 1
    %s1483 = scalar_lea.sflag [#allocation3], 1
    %1484 = vsyncpa %s1483, 1
    %1485 = vsyncpa [#allocation6], 1
    %1486 = vsyncpa [#allocation4], 1
    %s1487 = scalar_lea.sflag [#allocation4], 1
    %1488 = vsyncpa %s1487, 1

</llo_original>
